<compile_context>
chip_gen: v6e
topology: v6e:2x2x1
jax: 0.10.0
libtpu: 0.0.40
codegen_flags: <defaults>
</compile_context>

<pallas_src>
import functools

import numpy as np
import jax
import jax.numpy as jnp
from jax import lax
from jax.experimental import pallas as pl
from jax.experimental.pallas import tpu as pltpu

# ----------------------------- hyper-parameters (small demo) -----------------------------
BATCH = 2
NUM_NODES = 12          # != NHID so the GAT residual always takes the proj_residual branch,
                        # exactly like the reference code path when num_nodes != nhid.
NUM_FEATURES = 4
T_IN = 8
T_OUT = 4
NHEADS = 2
NHID = 16               # nhid == spatial_channels == out_channels
LAYERS = 2
END_CHANNELS = 32
ALPHA = 0.2             # LeakyReLU negative slope
BN_EPS = 1e-5


# =============================== fused Pallas kernel ===============================

def _stgat_kernel(x_ref, adj_ref, w_ref, p_ref, o_ref, cat_ref, *, alpha, layout):
    """Whole STGAT forward for one batch sample (grid axis = batch)."""
    N = adj_ref.shape[0]
    C = NHID
    adj = adj_ref[...]                                    # (N, N), additive bias (as in reference)

    def wmat(off):                                        # static slice of the bf16 weight slab
        r0, nr, nc = off
        return w_ref[r0:r0 + nr, 0:nc]

    def prow(off):                                        # (1, len) f32 bias row (row 0 of pslab)
        c0, nc = off
        return p_ref[0:1, c0:c0 + nc]

    def pcol(c0):                                         # (N, 1) per-node f32 column
        return p_ref[0:N, c0:c0 + 1]

    act = x_ref[0]                                        # (N, T_in * num_features) slab

    for blk in layout["blocks"]:
        T, cin, H, concat = blk["T"], blk["cin"], blk["H"], blk["concat"]
        TC = T * C

        # ---- TimeBlock: one structured matmul; branches folded as [w1+w3 | w2] ----
        conv = jnp.dot(act.astype(jnp.bfloat16), wmat(blk["m"]),
                       preferred_element_type=jnp.float32) + prow(blk["mb"])      # (N, 2*T*C)
        t_act = jnp.maximum(conv[:, :TC] + jax.nn.sigmoid(conv[:, TC:]), 0.0)     # (N, T*C)

        # ---- all GAT heads at once (head-stacked weights, bf16 MXU operands) ----
        t16 = t_act.astype(jnp.bfloat16)
        seq_all = jnp.dot(t16, wmat(blk["wseq"]), preferred_element_type=jnp.float32)   # (N, H*C)
        res_all = (jnp.dot(t16, wmat(blk["wproj"]), preferred_element_type=jnp.float32)
                   + prow(blk["bproj"]))                                                 # (N, H*C)
        f12 = (jnp.dot(seq_all.astype(jnp.bfloat16), wmat(blk["wf"]),
                       preferred_element_type=jnp.float32) + prow(blk["bf"]))            # (N, 2*H)

        # One tiny identity matmul transposes f12 -> (2H, N); replaces H K=1 outer products.
        e0 = layout["eye"]
        eye = p_ref[0:2 * H, e0:e0 + 2 * H]
        f12t = lax.dot_general(eye, f12, (((1,), (1,)), ((), ())),
                               preferred_element_type=jnp.float32)   # (2H, N): [a,i] = f12[i,a]

        acc = None
        for h in range(H):                                 # H <= 4, fully unrolled
            seq_h = seq_all[:, h * C:(h + 1) * C]          # (N, C) static lane slice
            logits = f12[:, h:h + 1] + f12t[H + h:H + h + 1, :]     # (N,1)+(1,N) -> (N,N)
            lrelu = jnp.where(logits > 0, logits, alpha * logits)
            # Reference uses softmax(leakyrelu(logits) + adj, dim=1): adj is an additive bias.
            scores = lrelu + adj
            scores = scores - jnp.max(scores, axis=1, keepdims=True)
            e = jnp.exp(scores)
            coefs = e * pl.reciprocal(jnp.sum(e, axis=1, keepdims=True), approx=True)
            ret = (jnp.dot(coefs.astype(jnp.bfloat16), seq_h.astype(jnp.bfloat16),
                           preferred_element_type=jnp.float32)
                   + res_all[:, h * C:(h + 1) * C])        # proj_residual branch (N != nhid)
            if concat:
                # ELU(alpha=1); min() keeps exp() off the positive branch (no transient inf).
                # TODO(synk): expm1 would be marginally more accurate for tiny negatives.
                ret = jnp.where(ret > 0, ret, jnp.exp(jnp.minimum(ret, 0.0)) - 1.0)
                cat_ref[:, h * C:(h + 1) * C] = ret        # static-offset vst into scratch slab
            else:
                acc = ret if acc is None else acc + ret

        if concat:
            t2 = cat_ref[:, 0:H * C]                       # lane-dense (N, H*C), no concatenate
            T2 = H
        else:
            t2 = acc * (1.0 / H)                           # sum(heads) / nheads
            T2 = 1

        # ---- block residual (+ReLU) + eval-mode BatchNorm2d(num_nodes) ----
        if cin == C:                                       # channels match -> residual path
            y = jnp.maximum(t2 + act[:, (T - T2) * C:], 0.0)   # last T2 timesteps of input
        else:
            y = jnp.maximum(t2, 0.0)
        act = y * pcol(blk["bn"]) + pcol(blk["bn"] + 1)    # per-node scale / shift

    # ---- output head: Conv1d(nhid->end,1) -> ReLU -> BN1d(eval) -> Conv1d(end->T_out,1) ----
    outp = layout["out"]
    hid = jnp.maximum(jnp.dot(act.astype(jnp.bfloat16), wmat(outp["w1"]),
                              preferred_element_type=jnp.float32) + prow(outp["b1"]), 0.0)
    hid = hid * prow(outp["s"]) + prow(outp["sh"])
    o_ref[0] = (jnp.dot(hid.astype(jnp.bfloat16), wmat(outp["w2"]),
                        preferred_element_type=jnp.float32) + prow(outp["b2"]))   # (N, T_out)


def stgat_forward(params, A_hat, X):
    B, N, T, F_ = X.shape
    xslab = X.reshape(B, N, T * F_)                        # slab layout: lane = t*Cin + c
    wslab, pslab, layout = params["wslab"], params["pslab"], params["layout"]
    kern = functools.partial(_stgat_kernel, alpha=ALPHA, layout=layout)

    out = pl.pallas_call(
        kern,
        out_shape=jax.ShapeDtypeStruct((B, N, T_OUT), jnp.float32),
        grid=(B,),
        in_specs=[pl.BlockSpec((1, N, T * F_), lambda b: (b, 0, 0)),
                  pl.BlockSpec((N, N), lambda b: (0, 0)),
                  pl.BlockSpec(wslab.shape, lambda b: (0, 0)),     # whole slab, 1 DMA
                  pl.BlockSpec(pslab.shape, lambda b: (0, 0))],    # whole slab, 1 DMA
        out_specs=pl.BlockSpec((1, N, T_OUT), lambda b: (b, 0, 0)),
        scratch_shapes=[pltpu.VMEM((NUM_NODES, layout["cat_w"]), jnp.float32)],
        compiler_params=pltpu.CompilerParams(
            dimension_semantics=("parallel",),             # batch split across TCs on v7x
            vmem_limit_bytes=32 * 1024 * 1024),
    )(xslab, A_hat, wslab, pslab)
    return out[..., None]                                  # (B, N, T_out, 1)


# =============================== parameter construction ===============================

class _KeyGen:
    def __init__(self, key):
        self.key = key

    def __call__(self, shape, scale=0.1):
        self.key, sub = jax.random.split(self.key)
        return np.asarray(scale * jax.random.normal(sub, shape, dtype=jnp.float32))


def _round_bf16(a):
    """f32 -> f32 rounded through bfloat16, so kernel and reference share exact weights."""
    return np.asarray(jnp.asarray(a, jnp.bfloat16).astype(jnp.float32))


def _round_up(x, m):
    return ((x + m - 1) // m) * m


def _build_timeblock_matrix(w13, w2, b13, b2, T, cin, cout):
    """Fold the (1,3) 'same'-padded convs (im2col row layout (3*cin, cout), rows = tap*cin + c)
    into one (T*cin, 2*T*cout) matrix acting on the (N, T*cin) slab.  The two linear branches
    (conv1, conv3) are pre-summed into w13, so only two column blocks remain: [w1+w3 | w2]."""
    M = np.zeros((T * cin, 2 * T * cout), np.float32)
    bias = np.zeros((1, 2 * T * cout), np.float32)
    for p, (w, b) in enumerate(((w13, b13), (w2, b2))):
        for t in range(T):
            col = p * T * cout + t * cout
            bias[0, col:col + cout] = b
            for k in range(3):                             # tap k reads input time t + k - 1
                tin = t + k - 1
                if 0 <= tin < T:
                    M[tin * cin:(tin + 1) * cin, col:col + cout] = w[k * cin:(k + 1) * cin, :]
    return M, bias


def _build_f12_matrix(wf1, wf2, bf1, bf2):
    """Block-diagonal (H*C, 2H) matrix computing every head's f_1 / f_2 scalar per node."""
    H, C = wf1.shape
    W = np.zeros((H * C, 2 * H), np.float32)
    for h in range(H):
        W[h * C:(h + 1) * C, h] = wf1[h]
        W[h * C:(h + 1) * C, H + h] = wf2[h]
    b = np.concatenate([bf1, bf2]).reshape(1, 2 * H).astype(np.float32)
    return W, b


def init_params(key):
    kg = _KeyGen(key)
    C = NHID
    N = NUM_NODES

    # ---- packed-slab builders: one bf16 weight slab + one f32 bias/BN/identity slab ----
    w_chunks, w_rows = [], 0

    def add_w(mat):
        nonlocal w_rows
        mat = np.asarray(mat, np.float32)
        off = (w_rows, mat.shape[0], mat.shape[1])
        w_chunks.append((w_rows, mat))
        w_rows = _round_up(w_rows + mat.shape[0], 16)      # bf16 sublane-tile aligned rows
        return off

    p_row_chunks, p_col_chunks = [], []
    p_ncols = 0

    def add_prow(vec):                                     # row-0 bias segment, lane-tile aligned
        nonlocal p_ncols
        vec = np.asarray(vec, np.float32).reshape(-1)
        off = (p_ncols, vec.size)
        p_row_chunks.append((p_ncols, vec))
        p_ncols = _round_up(p_ncols + vec.size, 128)
        return off

    def add_pcols(block):                                  # per-row column segment
        nonlocal p_ncols
        block = np.asarray(block, np.float32)
        off = p_ncols
        p_col_chunks.append((p_ncols, block))
        p_ncols = _round_up(p_ncols + block.shape[1], 128)
        return off

    blocks_layout, raw_blocks = [], []
    for i in range(LAYERS):
        cin = NUM_FEATURES if i == 0 else NHID
        T = T_IN if i == 0 else NHEADS                     # block-1 time axis = block-0 head count
        last = (i == LAYERS - 1)
        concat = not last
        H = NHEADS + 2 if last else NHEADS                 # reference bumps nheads by 2 on last layer
        fin = C * T                                        # GAT in_features

        # TimeBlock (3x Conv2d(cin, C, (1,3))): conv1/conv3 are linear -> fold (w1+w3).
        w1 = _round_bf16(kg((3 * cin, C))); w2 = _round_bf16(kg((3 * cin, C)))
        w3 = _round_bf16(kg((3 * cin, C)))
        b1, b2, b3 = kg((C,)), kg((C,)), kg((C,))
        w13 = _round_bf16(w1 + w3); b13 = b1 + b3
        M, Mb = _build_timeblock_matrix(w13, w2, b13, b2, T, cin, C)

        # GAT heads: seq_transformation (no bias), proj_residual (+bias), f_1, f_2.
        wseq = np.stack([_round_bf16(kg((fin, C))) for _ in range(H)])     # (H, fin, C)
        wproj = np.stack([_round_bf16(kg((fin, C))) for _ in range(H)])
        bproj = np.stack([kg((C,)) for _ in range(H)])                     # (H, C)
        wf1 = np.stack([_round_bf16(kg((C,))) for _ in range(H)])          # (H, C), bf16 in-kernel
        wf2 = np.stack([_round_bf16(kg((C,))) for _ in range(H)])
        bf1 = np.concatenate([kg((1,)) for _ in range(H)])                 # (H,)
        bf2 = np.concatenate([kg((1,)) for _ in range(H)])
        Wf, bfv = _build_f12_matrix(wf1, wf2, bf1, bf2)

        # BatchNorm2d(num_nodes), eval mode (PyTorch default running stats).
        gamma = np.ones(N, np.float32); beta = np.zeros(N, np.float32)
        mean = np.zeros(N, np.float32); var = np.ones(N, np.float32)
        bscale = gamma / np.sqrt(var + BN_EPS)
        bshift = beta - mean * bscale

        blocks_layout.append(dict(
            T=T, cin=cin, H=H, concat=concat,
            m=add_w(M),
            wseq=add_w(np.concatenate(list(wseq), axis=1)),                # (fin, H*C)
            wproj=add_w(np.concatenate(list(wproj), axis=1)),
            wf=add_w(Wf),
            mb=add_prow(Mb), bproj=add_prow(bproj.reshape(1, H * C)), bf=add_prow(bfv),
            bn=add_pcols(np.stack([bscale, bshift], axis=1))))             # (N, 2): scale | shift
        raw_blocks.append(dict(
            w13=jnp.asarray(w13), w2=jnp.asarray(w2),
            b13=jnp.asarray(b13), b2=jnp.asarray(b2),
            wseq=jnp.asarray(wseq), wproj=jnp.asarray(wproj), bproj=jnp.asarray(bproj),
            wf1=jnp.asarray(wf1), wf2=jnp.asarray(wf2),
            bf1=jnp.asarray(bf1), bf2=jnp.asarray(bf2),
            bn_scale=jnp.asarray(bscale), bn_shift=jnp.asarray(bshift), concat=concat))

    # Output head: Conv1d(nhid->end,1) -> ReLU -> BatchNorm1d(end) -> Conv1d(end->T_out,1).
    ow1 = _round_bf16(kg((C, END_CHANNELS))); ob1 = kg((END_CHANNELS,))
    og = np.ones(END_CHANNELS, np.float32); obeta = np.zeros(END_CHANNELS, np.float32)
    omu = np.zeros(END_CHANNELS, np.float32); ovar = np.ones(END_CHANNELS, np.float32)
    oscale = og / np.sqrt(ovar + BN_EPS); oshift = obeta - omu * oscale
    ow2 = _round_bf16(kg((END_CHANNELS, T_OUT))); ob2 = kg((T_OUT,))
    out_layout = dict(w1=add_w(ow1), w2=add_w(ow2),
                      b1=add_prow(ob1), s=add_prow(oscale), sh=add_prow(oshift),
                      b2=add_prow(ob2))
    raw_out = dict(w1=jnp.asarray(ow1), b1=jnp.asarray(ob1), s=jnp.asarray(oscale),
                   sh=jnp.asarray(oshift), w2=jnp.asarray(ow2), b2=jnp.asarray(ob2))

    eye_n = 2 * (NHEADS + 2)                               # largest 2H used by any block
    eye_off = add_pcols(np.eye(eye_n, dtype=np.float32))   # small identity for the f12 transpose

    # ---- materialize the two slabs ----
    w_ncols = _round_up(max(m.shape[1] for _, m in w_chunks), 128)
    wslab = np.zeros((max(w_rows, 16), w_ncols), np.float32)
    for r0, m in w_chunks:
        wslab[r0:r0 + m.shape[0], :m.shape[1]] = m
    p_nrows = max(N, eye_n, 8)
    pslab = np.zeros((p_nrows, p_ncols), np.float32)
    for c0, v in p_row_chunks:
        pslab[0, c0:c0 + v.size] = v
    for c0, blkv in p_col_chunks:
        pslab[:blkv.shape[0], c0:c0 + blkv.shape[1]] = blkv

    cat_w = max([b["H"] * C for b in blocks_layout if b["concat"]] + [C])
    layout = dict(blocks=tuple(blocks_layout), out=out_layout, eye=eye_off, cat_w=cat_w)
    return {"wslab": jnp.asarray(wslab, jnp.bfloat16),
            "pslab": jnp.asarray(pslab, jnp.float32),
            "layout": layout,
            "raw": {"blocks": raw_blocks, "output": raw_out}}


# =============================== pure-JAX reference (validation only) ===============================

def reference_forward(raw, A_hat, X):
    """Straightforward XLA re-implementation of the PyTorch eval forward (same rounded weights)."""
    out = X
    for blk in raw["blocks"]:
        B, N, T, _ = out.shape
        Xpad = jnp.pad(out, ((0, 0), (0, 0), (1, 1), (0, 0)))
        Xcat = jnp.concatenate([Xpad[:, :, k:k + T, :] for k in range(3)], axis=-1)
        conv13 = jnp.einsum('bntf,fo->bnto', Xcat, blk["w13"]) + blk["b13"]
        conv2 = jnp.einsum('bntf,fo->bnto', Xcat, blk["w2"]) + blk["b2"]
        t4 = jnp.maximum(conv13 + jax.nn.sigmoid(conv2), 0.0)                   # (B,N,T,C)
        t = t4.reshape(B, N, -1)
        heads = []
        H = blk["wseq"].shape[0]
        for h in range(H):
            seq = jnp.einsum('bnf,fc->bnc', t, blk["wseq"][h])
            f1 = jnp.einsum('bnc,c->bn', seq, blk["wf1"][h]) + blk["bf1"][h]
            f2 = jnp.einsum('bnc,c->bn', seq, blk["wf2"][h]) + blk["bf2"][h]
            logits = f1[:, :, None] + f2[:, None, :]
            lrelu = jnp.where(logits > 0, logits, ALPHA * logits)
            coefs = jax.nn.softmax(lrelu + A_hat[None], axis=2)
            ret = jnp.einsum('bij,bjc->bic', coefs, seq)
            ret = ret + jnp.einsum('bnf,fc->bnc', t, blk["wproj"][h]) + blk["bproj"][h]
            if blk["concat"]:
                ret = jnp.where(ret > 0, ret, jnp.exp(jnp.minimum(ret, 0.0)) - 1.0)
            heads.append(ret)
        t2 = jnp.concatenate(heads, axis=-1) if blk["concat"] else sum(heads) / H
        t2 = t2.reshape(B, N, -1, NHID)
        if t2.shape[-1] == out.shape[-1]:
            t3 = jnp.maximum(t2 + out[:, :, -t2.shape[2]:, :], 0.0)
        else:
            t3 = jnp.maximum(t2, 0.0)
        out = (t3 * blk["bn_scale"][None, :, None, None]
               + blk["bn_shift"][None, :, None, None])
    op = raw["output"]
    emb = out.reshape(out.shape[0], out.shape[1], -1)
    h = jnp.maximum(jnp.einsum('bnc,ce->bne', emb, op["w1"]) + op["b1"], 0.0)
    h = h * op["s"] + op["sh"]
    o = jnp.einsum('bne,et->bnt', h, op["w2"]) + op["b2"]
    return o[..., None]


# =============================== demo ===============================

if __name__ == "__main__":
    assert NUM_NODES != NHID  # keeps the GAT residual on the proj_residual branch

    key = jax.random.PRNGKey(0)
    kp, kx, ka = jax.random.split(key, 3)
    params = init_params(kp)

    X = jax.random.normal(kx, (BATCH, NUM_NODES, T_IN, NUM_FEATURES), dtype=jnp.float32)
    A_hat = 0.1 * jax.random.normal(ka, (NUM_NODES, NUM_NODES), dtype=jnp.float32)

    out = stgat_forward(params, A_hat, X)
    out = jax.block_until_ready(out)
    assert out.shape == (BATCH, NUM_NODES, T_OUT, 1)
    assert bool(jnp.all(jnp.isfinite(out)))

    ref = jax.block_until_ready(reference_forward(params["raw"], A_hat, X))
    np.testing.assert_allclose(np.asarray(out), np.asarray(ref), rtol=3e-2, atol=3e-2)

    print("KERNEL_OK")
</pallas_src>

<mosaic_0001>
module attributes {stable_mosaic.version = 11 : i64} {
  func.func @_stgat_kernel(%arg0: i32, %arg1: memref<1x12x32xf32, #tpu.memory_space<vmem>>, %arg2: memref<12x12xf32, #tpu.memory_space<vmem>>, %arg3: memref<528x256xbf16, #tpu.memory_space<vmem>>, %arg4: memref<12x1792xf32, #tpu.memory_space<vmem>>, %arg5: memref<1x12x4xf32, #tpu.memory_space<vmem>>, %arg6: memref<12x32xf32, #tpu.memory_space<vmem>>) attributes {dimension_semantics = [#tpu.dimension_semantics<parallel>], iteration_bounds = array<i64: 2>, scalar_prefetch = 0 : i64, scratch_operands = 1 : i64, tpu.core_type = #tpu.core_type<tc>, window_params = [{transform_indices = @transform_0, window_bounds = array<i64: 1, 12, 32>}, {pipeline_mode = #tpu.pipeline_mode<synchronous>, transform_indices = @transform_1, window_bounds = array<i64: 12, 12>}, {pipeline_mode = #tpu.pipeline_mode<synchronous>, transform_indices = @transform_2, window_bounds = array<i64: 528, 256>}, {pipeline_mode = #tpu.pipeline_mode<synchronous>, transform_indices = @transform_3, window_bounds = array<i64: 12, 1792>}, {transform_indices = @transform_4, window_bounds = array<i64: 1, 12, 4>}]} {
    %c0 = arith.constant 0 : index
    %c0_0 = arith.constant 0 : index
    %0 = vector.load %arg2[%c0, %c0_0] : memref<12x12xf32, #tpu.memory_space<vmem>>, vector<12x12xf32>
    %c0_1 = arith.constant 0 : index
    %c0_2 = arith.constant 0 : index
    %c0_3 = arith.constant 0 : index
    %1 = vector.load %arg1[%c0_1, %c0_2, %c0_3] : memref<1x12x32xf32, #tpu.memory_space<vmem>>, vector<1x12x32xf32>
    %2 = vector.shape_cast %1 : vector<1x12x32xf32> to vector<12x32xf32>
    %3 = arith.truncf %2 : vector<12x32xf32> to vector<12x32xbf16>
    %c0_4 = arith.constant 0 : index
    %c0_5 = arith.constant 0 : index
    %4 = vector.load %arg3[%c0_4, %c0_5] : memref<528x256xbf16, #tpu.memory_space<vmem>>, vector<32x256xbf16>
    %cst = arith.constant dense<0.000000e+00> : vector<12x256xf32>
    %5 = tpu.matmul %3, %4, %cst {dimension_numbers = #tpu.dot_dimension_numbers<[1], [0], [0], [1], [0, 0, 1, 1], [], []>} : vector<12x32xbf16>, vector<32x256xbf16>, vector<12x256xf32> -> vector<12x256xf32>
    %c0_6 = arith.constant 0 : index
    %c0_7 = arith.constant 0 : index
    %6 = vector.load %arg4[%c0_6, %c0_7] : memref<12x1792xf32, #tpu.memory_space<vmem>>, vector<1x256xf32>
    %7 = vector.broadcast %6 : vector<1x256xf32> to vector<12x256xf32>
    %8 = arith.addf %5, %7 : vector<12x256xf32>
    %9 = vector.extract_strided_slice %8 {offsets = [0, 0], sizes = [12, 128], strides = [1, 1]} : vector<12x256xf32> to vector<12x128xf32>
    %10 = vector.extract_strided_slice %8 {offsets = [0, 128], sizes = [12, 128], strides = [1, 1]} : vector<12x256xf32> to vector<12x128xf32>
    %11 = arith.negf %10 : vector<12x128xf32>
    %12 = math.exp %11 : vector<12x128xf32>
    %cst_8 = arith.constant 1.000000e+00 : f32
    %13 = vector.broadcast %cst_8 : f32 to vector<12x128xf32>
    %14 = arith.addf %13, %12 : vector<12x128xf32>
    %15 = arith.divf %13, %14 : vector<12x128xf32>
    %16 = arith.addf %9, %15 : vector<12x128xf32>
    %cst_9 = arith.constant 0.000000e+00 : f32
    %17 = vector.broadcast %cst_9 : f32 to vector<12x128xf32>
    %18 = arith.maximumf %16, %17 : vector<12x128xf32>
    %19 = arith.truncf %18 : vector<12x128xf32> to vector<12x128xbf16>
    %c32 = arith.constant 32 : index
    %c0_10 = arith.constant 0 : index
    %20 = vector.load %arg3[%c32, %c0_10] : memref<528x256xbf16, #tpu.memory_space<vmem>>, vector<128x32xbf16>
    %cst_11 = arith.constant dense<0.000000e+00> : vector<12x32xf32>
    %21 = tpu.matmul %19, %20, %cst_11 {dimension_numbers = #tpu.dot_dimension_numbers<[1], [0], [0], [1], [0, 0, 1, 1], [], []>} : vector<12x128xbf16>, vector<128x32xbf16>, vector<12x32xf32> -> vector<12x32xf32>
    %c160 = arith.constant 160 : index
    %c0_12 = arith.constant 0 : index
    %22 = vector.load %arg3[%c160, %c0_12] : memref<528x256xbf16, #tpu.memory_space<vmem>>, vector<128x32xbf16>
    %cst_13 = arith.constant dense<0.000000e+00> : vector<12x32xf32>
    %23 = tpu.matmul %19, %22, %cst_13 {dimension_numbers = #tpu.dot_dimension_numbers<[1], [0], [0], [1], [0, 0, 1, 1], [], []>} : vector<12x128xbf16>, vector<128x32xbf16>, vector<12x32xf32> -> vector<12x32xf32>
    %c0_14 = arith.constant 0 : index
    %c256 = arith.constant 256 : index
    %24 = vector.load %arg4[%c0_14, %c256] : memref<12x1792xf32, #tpu.memory_space<vmem>>, vector<1x32xf32>
    %25 = vector.broadcast %24 : vector<1x32xf32> to vector<12x32xf32>
    %26 = arith.addf %23, %25 : vector<12x32xf32>
    %27 = arith.truncf %21 : vector<12x32xf32> to vector<12x32xbf16>
    %c288 = arith.constant 288 : index
    %c0_15 = arith.constant 0 : index
    %28 = vector.load %arg3[%c288, %c0_15] : memref<528x256xbf16, #tpu.memory_space<vmem>>, vector<32x4xbf16>
    %cst_16 = arith.constant dense<0.000000e+00> : vector<12x4xf32>
    %29 = tpu.matmul %27, %28, %cst_16 {dimension_numbers = #tpu.dot_dimension_numbers<[1], [0], [0], [1], [0, 0, 1, 1], [], []>} : vector<12x32xbf16>, vector<32x4xbf16>, vector<12x4xf32> -> vector<12x4xf32>
    %c0_17 = arith.constant 0 : index
    %c384 = arith.constant 384 : index
    %30 = vector.load %arg4[%c0_17, %c384] : memref<12x1792xf32, #tpu.memory_space<vmem>>, vector<1x4xf32>
    %31 = vector.broadcast %30 : vector<1x4xf32> to vector<12x4xf32>
    %32 = arith.addf %29, %31 : vector<12x4xf32>
    %c0_18 = arith.constant 0 : index
    %c1664 = arith.constant 1664 : index
    %33 = vector.load %arg4[%c0_18, %c1664] : memref<12x1792xf32, #tpu.memory_space<vmem>>, vector<4x4xf32>
    %cst_19 = arith.constant dense<0.000000e+00> : vector<4x12xf32>
    %34 = tpu.matmul %33, %32, %cst_19 {dimension_numbers = #tpu.dot_dimension_numbers<[1], [1], [0], [0], [0, 0, 1, 0], [], []>} : vector<4x4xf32>, vector<12x4xf32>, vector<4x12xf32> -> vector<4x12xf32>
    %35 = vector.extract_strided_slice %21 {offsets = [0, 0], sizes = [12, 16], strides = [1, 1]} : vector<12x32xf32> to vector<12x16xf32>
    %36 = vector.extract_strided_slice %32 {offsets = [0, 0], sizes = [12, 1], strides = [1, 1]} : vector<12x4xf32> to vector<12x1xf32>
    %37 = vector.extract_strided_slice %34 {offsets = [2, 0], sizes = [1, 12], strides = [1, 1]} : vector<4x12xf32> to vector<1x12xf32>
    %38 = vector.broadcast %36 : vector<12x1xf32> to vector<12x12xf32>
    %39 = vector.broadcast %37 : vector<1x12xf32> to vector<12x12xf32>
    %40 = arith.addf %38, %39 : vector<12x12xf32>
    %cst_20 = arith.constant 0.000000e+00 : f32
    %41 = vector.broadcast %cst_20 : f32 to vector<12x12xf32>
    %42 = arith.cmpf ogt, %40, %41 : vector<12x12xf32>
    %cst_21 = arith.constant 2.000000e-01 : f32
    %43 = vector.broadcast %cst_21 : f32 to vector<12x12xf32>
    %44 = arith.mulf %43, %40 : vector<12x12xf32>
    %45 = arith.select %42, %40, %44 : vector<12x12xi1>, vector<12x12xf32>
    %46 = arith.addf %45, %0 : vector<12x12xf32>
    %cst_22 = arith.constant dense<0xFF800000> : vector<12xf32>
    %47 = vector.multi_reduction <maximumf>, %46, %cst_22 [1] : vector<12x12xf32> to vector<12xf32>
    %48 = vector.shape_cast %47 : vector<12xf32> to vector<12x1xf32>
    %49 = vector.broadcast %48 : vector<12x1xf32> to vector<12x12xf32>
    %50 = arith.subf %46, %49 : vector<12x12xf32>
    %51 = math.exp %50 : vector<12x12xf32>
    %cst_23 = arith.constant dense<0.000000e+00> : vector<12xf32>
    %52 = vector.multi_reduction <add>, %51, %cst_23 [1] : vector<12x12xf32> to vector<12xf32>
    %53 = vector.shape_cast %52 : vector<12xf32> to vector<12x1xf32>
    %54 = tpu.reciprocal %53 {approx = true} : vector<12x1xf32> -> vector<12x1xf32>
    %55 = vector.broadcast %54 : vector<12x1xf32> to vector<12x12xf32>
    %56 = arith.mulf %51, %55 : vector<12x12xf32>
    %57 = arith.truncf %56 : vector<12x12xf32> to vector<12x12xbf16>
    %58 = arith.truncf %35 : vector<12x16xf32> to vector<12x16xbf16>
    %cst_24 = arith.constant dense<0.000000e+00> : vector<12x16xf32>
    %59 = tpu.matmul %57, %58, %cst_24 {dimension_numbers = #tpu.dot_dimension_numbers<[1], [0], [0], [1], [0, 0, 1, 1], [], []>} : vector<12x12xbf16>, vector<12x16xbf16>, vector<12x16xf32> -> vector<12x16xf32>
    %60 = vector.extract_strided_slice %26 {offsets = [0, 0], sizes = [12, 16], strides = [1, 1]} : vector<12x32xf32> to vector<12x16xf32>
    %61 = arith.addf %59, %60 : vector<12x16xf32>
    %cst_25 = arith.constant 0.000000e+00 : f32
    %62 = vector.broadcast %cst_25 : f32 to vector<12x16xf32>
    %63 = arith.cmpf ogt, %61, %62 : vector<12x16xf32>
    %cst_26 = arith.constant 0.000000e+00 : f32
    %64 = vector.broadcast %cst_26 : f32 to vector<12x16xf32>
    %65 = arith.minimumf %61, %64 : vector<12x16xf32>
    %66 = math.exp %65 : vector<12x16xf32>
    %cst_27 = arith.constant 1.000000e+00 : f32
    %67 = vector.broadcast %cst_27 : f32 to vector<12x16xf32>
    %68 = arith.subf %66, %67 : vector<12x16xf32>
    %69 = arith.select %63, %61, %68 : vector<12x16xi1>, vector<12x16xf32>
    %c0_28 = arith.constant 0 : index
    %c0_29 = arith.constant 0 : index
    %70 = vector.load %arg6[%c0_28, %c0_29] : memref<12x32xf32, #tpu.memory_space<vmem>>, vector<12x16xf32>
    tpu.vector_store %arg6[%c0_28, %c0_29], %69 {strides = array<i32>} : memref<12x32xf32, #tpu.memory_space<vmem>>, vector<12x16xf32>,
    %71 = vector.extract_strided_slice %21 {offsets = [0, 16], sizes = [12, 16], strides = [1, 1]} : vector<12x32xf32> to vector<12x16xf32>
    %72 = vector.extract_strided_slice %32 {offsets = [0, 1], sizes = [12, 1], strides = [1, 1]} : vector<12x4xf32> to vector<12x1xf32>
    %73 = vector.extract_strided_slice %34 {offsets = [3, 0], sizes = [1, 12], strides = [1, 1]} : vector<4x12xf32> to vector<1x12xf32>
    %74 = vector.broadcast %72 : vector<12x1xf32> to vector<12x12xf32>
    %75 = vector.broadcast %73 : vector<1x12xf32> to vector<12x12xf32>
    %76 = arith.addf %74, %75 : vector<12x12xf32>
    %cst_30 = arith.constant 0.000000e+00 : f32
    %77 = vector.broadcast %cst_30 : f32 to vector<12x12xf32>
    %78 = arith.cmpf ogt, %76, %77 : vector<12x12xf32>
    %cst_31 = arith.constant 2.000000e-01 : f32
    %79 = vector.broadcast %cst_31 : f32 to vector<12x12xf32>
    %80 = arith.mulf %79, %76 : vector<12x12xf32>
    %81 = arith.select %78, %76, %80 : vector<12x12xi1>, vector<12x12xf32>
    %82 = arith.addf %81, %0 : vector<12x12xf32>
    %cst_32 = arith.constant dense<0xFF800000> : vector<12xf32>
    %83 = vector.multi_reduction <maximumf>, %82, %cst_32 [1] : vector<12x12xf32> to vector<12xf32>
    %84 = vector.shape_cast %83 : vector<12xf32> to vector<12x1xf32>
    %85 = vector.broadcast %84 : vector<12x1xf32> to vector<12x12xf32>
    %86 = arith.subf %82, %85 : vector<12x12xf32>
    %87 = math.exp %86 : vector<12x12xf32>
    %cst_33 = arith.constant dense<0.000000e+00> : vector<12xf32>
    %88 = vector.multi_reduction <add>, %87, %cst_33 [1] : vector<12x12xf32> to vector<12xf32>
    %89 = vector.shape_cast %88 : vector<12xf32> to vector<12x1xf32>
    %90 = tpu.reciprocal %89 {approx = true} : vector<12x1xf32> -> vector<12x1xf32>
    %91 = vector.broadcast %90 : vector<12x1xf32> to vector<12x12xf32>
    %92 = arith.mulf %87, %91 : vector<12x12xf32>
    %93 = arith.truncf %92 : vector<12x12xf32> to vector<12x12xbf16>
    %94 = arith.truncf %71 : vector<12x16xf32> to vector<12x16xbf16>
    %cst_34 = arith.constant dense<0.000000e+00> : vector<12x16xf32>
    %95 = tpu.matmul %93, %94, %cst_34 {dimension_numbers = #tpu.dot_dimension_numbers<[1], [0], [0], [1], [0, 0, 1, 1], [], []>} : vector<12x12xbf16>, vector<12x16xbf16>, vector<12x16xf32> -> vector<12x16xf32>
    %96 = vector.extract_strided_slice %26 {offsets = [0, 16], sizes = [12, 16], strides = [1, 1]} : vector<12x32xf32> to vector<12x16xf32>
    %97 = arith.addf %95, %96 : vector<12x16xf32>
    %cst_35 = arith.constant 0.000000e+00 : f32
    %98 = vector.broadcast %cst_35 : f32 to vector<12x16xf32>
    %99 = arith.cmpf ogt, %97, %98 : vector<12x16xf32>
    %cst_36 = arith.constant 0.000000e+00 : f32
    %100 = vector.broadcast %cst_36 : f32 to vector<12x16xf32>
    %101 = arith.minimumf %97, %100 : vector<12x16xf32>
    %102 = math.exp %101 : vector<12x16xf32>
    %cst_37 = arith.constant 1.000000e+00 : f32
    %103 = vector.broadcast %cst_37 : f32 to vector<12x16xf32>
    %104 = arith.subf %102, %103 : vector<12x16xf32>
    %105 = arith.select %99, %97, %104 : vector<12x16xi1>, vector<12x16xf32>
    %c0_38 = arith.constant 0 : index
    %c16 = arith.constant 16 : index
    %106 = vector.load %arg6[%c0_38, %c16] : memref<12x32xf32, #tpu.memory_space<vmem>>, vector<12x16xf32>
    tpu.vector_store %arg6[%c0_38, %c16], %105 {strides = array<i32>} : memref<12x32xf32, #tpu.memory_space<vmem>>, vector<12x16xf32>,
    %c0_39 = arith.constant 0 : index
    %c0_40 = arith.constant 0 : index
    %107 = vector.load %arg6[%c0_39, %c0_40] : memref<12x32xf32, #tpu.memory_space<vmem>>, vector<12x32xf32>
    %cst_41 = arith.constant 0.000000e+00 : f32
    %108 = vector.broadcast %cst_41 : f32 to vector<12x32xf32>
    %109 = arith.maximumf %107, %108 : vector<12x32xf32>
    %c0_42 = arith.constant 0 : index
    %c512 = arith.constant 512 : index
    %110 = vector.load %arg4[%c0_42, %c512] : memref<12x1792xf32, #tpu.memory_space<vmem>>, vector<12x1xf32>
    %111 = vector.broadcast %110 : vector<12x1xf32> to vector<12x32xf32>
    %112 = arith.mulf %109, %111 : vector<12x32xf32>
    %c0_43 = arith.constant 0 : index
    %c513 = arith.constant 513 : index
    %113 = vector.load %arg4[%c0_43, %c513] : memref<12x1792xf32, #tpu.memory_space<vmem>>, vector<12x1xf32>
    %114 = vector.broadcast %113 : vector<12x1xf32> to vector<12x32xf32>
    %115 = arith.addf %112, %114 : vector<12x32xf32>
    %116 = arith.truncf %115 : vector<12x32xf32> to vector<12x32xbf16>
    %c320 = arith.constant 320 : index
    %c0_44 = arith.constant 0 : index
    %117 = vector.load %arg3[%c320, %c0_44] : memref<528x256xbf16, #tpu.memory_space<vmem>>, vector<32x64xbf16>
    %cst_45 = arith.constant dense<0.000000e+00> : vector<12x64xf32>
    %118 = tpu.matmul %116, %117, %cst_45 {dimension_numbers = #tpu.dot_dimension_numbers<[1], [0], [0], [1], [0, 0, 1, 1], [], []>} : vector<12x32xbf16>, vector<32x64xbf16>, vector<12x64xf32> -> vector<12x64xf32>
    %c0_46 = arith.constant 0 : index
    %c640 = arith.constant 640 : index
    %119 = vector.load %arg4[%c0_46, %c640] : memref<12x1792xf32, #tpu.memory_space<vmem>>, vector<1x64xf32>
    %120 = vector.broadcast %119 : vector<1x64xf32> to vector<12x64xf32>
    %121 = arith.addf %118, %120 : vector<12x64xf32>
    %122 = vector.extract_strided_slice %121 {offsets = [0, 0], sizes = [12, 32], strides = [1, 1]} : vector<12x64xf32> to vector<12x32xf32>
    %123 = vector.extract_strided_slice %121 {offsets = [0, 32], sizes = [12, 32], strides = [1, 1]} : vector<12x64xf32> to vector<12x32xf32>
    %124 = arith.negf %123 : vector<12x32xf32>
    %125 = math.exp %124 : vector<12x32xf32>
    %cst_47 = arith.constant 1.000000e+00 : f32
    %126 = vector.broadcast %cst_47 : f32 to vector<12x32xf32>
    %127 = arith.addf %126, %125 : vector<12x32xf32>
    %128 = arith.divf %126, %127 : vector<12x32xf32>
    %129 = arith.addf %122, %128 : vector<12x32xf32>
    %cst_48 = arith.constant 0.000000e+00 : f32
    %130 = vector.broadcast %cst_48 : f32 to vector<12x32xf32>
    %131 = arith.maximumf %129, %130 : vector<12x32xf32>
    %132 = arith.truncf %131 : vector<12x32xf32> to vector<12x32xbf16>
    %c352 = arith.constant 352 : index
    %c0_49 = arith.constant 0 : index
    %133 = vector.load %arg3[%c352, %c0_49] : memref<528x256xbf16, #tpu.memory_space<vmem>>, vector<32x64xbf16>
    %cst_50 = arith.constant dense<0.000000e+00> : vector<12x64xf32>
    %134 = tpu.matmul %132, %133, %cst_50 {dimension_numbers = #tpu.dot_dimension_numbers<[1], [0], [0], [1], [0, 0, 1, 1], [], []>} : vector<12x32xbf16>, vector<32x64xbf16>, vector<12x64xf32> -> vector<12x64xf32>
    %c384_51 = arith.constant 384 : index
    %c0_52 = arith.constant 0 : index
    %135 = vector.load %arg3[%c384_51, %c0_52] : memref<528x256xbf16, #tpu.memory_space<vmem>>, vector<32x64xbf16>
    %cst_53 = arith.constant dense<0.000000e+00> : vector<12x64xf32>
    %136 = tpu.matmul %132, %135, %cst_53 {dimension_numbers = #tpu.dot_dimension_numbers<[1], [0], [0], [1], [0, 0, 1, 1], [], []>} : vector<12x32xbf16>, vector<32x64xbf16>, vector<12x64xf32> -> vector<12x64xf32>
    %c0_54 = arith.constant 0 : index
    %c768 = arith.constant 768 : index
    %137 = vector.load %arg4[%c0_54, %c768] : memref<12x1792xf32, #tpu.memory_space<vmem>>, vector<1x64xf32>
    %138 = vector.broadcast %137 : vector<1x64xf32> to vector<12x64xf32>
    %139 = arith.addf %136, %138 : vector<12x64xf32>
    %140 = arith.truncf %134 : vector<12x64xf32> to vector<12x64xbf16>
    %c416 = arith.constant 416 : index
    %c0_55 = arith.constant 0 : index
    %141 = vector.load %arg3[%c416, %c0_55] : memref<528x256xbf16, #tpu.memory_space<vmem>>, vector<64x8xbf16>
    %cst_56 = arith.constant dense<0.000000e+00> : vector<12x8xf32>
    %142 = tpu.matmul %140, %141, %cst_56 {dimension_numbers = #tpu.dot_dimension_numbers<[1], [0], [0], [1], [0, 0, 1, 1], [], []>} : vector<12x64xbf16>, vector<64x8xbf16>, vector<12x8xf32> -> vector<12x8xf32>
    %c0_57 = arith.constant 0 : index
    %c896 = arith.constant 896 : index
    %143 = vector.load %arg4[%c0_57, %c896] : memref<12x1792xf32, #tpu.memory_space<vmem>>, vector<1x8xf32>
    %144 = vector.broadcast %143 : vector<1x8xf32> to vector<12x8xf32>
    %145 = arith.addf %142, %144 : vector<12x8xf32>
    %c0_58 = arith.constant 0 : index
    %c1664_59 = arith.constant 1664 : index
    %146 = vector.load %arg4[%c0_58, %c1664_59] : memref<12x1792xf32, #tpu.memory_space<vmem>>, vector<8x8xf32>
    %cst_60 = arith.constant dense<0.000000e+00> : vector<8x12xf32>
    %147 = tpu.matmul %146, %145, %cst_60 {dimension_numbers = #tpu.dot_dimension_numbers<[1], [1], [0], [0], [0, 0, 1, 0], [], []>} : vector<8x8xf32>, vector<12x8xf32>, vector<8x12xf32> -> vector<8x12xf32>
    %148 = vector.extract_strided_slice %134 {offsets = [0, 0], sizes = [12, 16], strides = [1, 1]} : vector<12x64xf32> to vector<12x16xf32>
    %149 = vector.extract_strided_slice %145 {offsets = [0, 0], sizes = [12, 1], strides = [1, 1]} : vector<12x8xf32> to vector<12x1xf32>
    %150 = vector.extract_strided_slice %147 {offsets = [4, 0], sizes = [1, 12], strides = [1, 1]} : vector<8x12xf32> to vector<1x12xf32>
    %151 = vector.broadcast %149 : vector<12x1xf32> to vector<12x12xf32>
    %152 = vector.broadcast %150 : vector<1x12xf32> to vector<12x12xf32>
    %153 = arith.addf %151, %152 : vector<12x12xf32>
    %cst_61 = arith.constant 0.000000e+00 : f32
    %154 = vector.broadcast %cst_61 : f32 to vector<12x12xf32>
    %155 = arith.cmpf ogt, %153, %154 : vector<12x12xf32>
    %cst_62 = arith.constant 2.000000e-01 : f32
    %156 = vector.broadcast %cst_62 : f32 to vector<12x12xf32>
    %157 = arith.mulf %156, %153 : vector<12x12xf32>
    %158 = arith.select %155, %153, %157 : vector<12x12xi1>, vector<12x12xf32>
    %159 = arith.addf %158, %0 : vector<12x12xf32>
    %cst_63 = arith.constant dense<0xFF800000> : vector<12xf32>
    %160 = vector.multi_reduction <maximumf>, %159, %cst_63 [1] : vector<12x12xf32> to vector<12xf32>
    %161 = vector.shape_cast %160 : vector<12xf32> to vector<12x1xf32>
    %162 = vector.broadcast %161 : vector<12x1xf32> to vector<12x12xf32>
    %163 = arith.subf %159, %162 : vector<12x12xf32>
    %164 = math.exp %163 : vector<12x12xf32>
    %cst_64 = arith.constant dense<0.000000e+00> : vector<12xf32>
    %165 = vector.multi_reduction <add>, %164, %cst_64 [1] : vector<12x12xf32> to vector<12xf32>
    %166 = vector.shape_cast %165 : vector<12xf32> to vector<12x1xf32>
    %167 = tpu.reciprocal %166 {approx = true} : vector<12x1xf32> -> vector<12x1xf32>
    %168 = vector.broadcast %167 : vector<12x1xf32> to vector<12x12xf32>
    %169 = arith.mulf %164, %168 : vector<12x12xf32>
    %170 = arith.truncf %169 : vector<12x12xf32> to vector<12x12xbf16>
    %171 = arith.truncf %148 : vector<12x16xf32> to vector<12x16xbf16>
    %cst_65 = arith.constant dense<0.000000e+00> : vector<12x16xf32>
    %172 = tpu.matmul %170, %171, %cst_65 {dimension_numbers = #tpu.dot_dimension_numbers<[1], [0], [0], [1], [0, 0, 1, 1], [], []>} : vector<12x12xbf16>, vector<12x16xbf16>, vector<12x16xf32> -> vector<12x16xf32>
    %173 = vector.extract_strided_slice %139 {offsets = [0, 0], sizes = [12, 16], strides = [1, 1]} : vector<12x64xf32> to vector<12x16xf32>
    %174 = arith.addf %172, %173 : vector<12x16xf32>
    %175 = vector.extract_strided_slice %134 {offsets = [0, 16], sizes = [12, 16], strides = [1, 1]} : vector<12x64xf32> to vector<12x16xf32>
    %176 = vector.extract_strided_slice %145 {offsets = [0, 1], sizes = [12, 1], strides = [1, 1]} : vector<12x8xf32> to vector<12x1xf32>
    %177 = vector.extract_strided_slice %147 {offsets = [5, 0], sizes = [1, 12], strides = [1, 1]} : vector<8x12xf32> to vector<1x12xf32>
    %178 = vector.broadcast %176 : vector<12x1xf32> to vector<12x12xf32>
    %179 = vector.broadcast %177 : vector<1x12xf32> to vector<12x12xf32>
    %180 = arith.addf %178, %179 : vector<12x12xf32>
    %cst_66 = arith.constant 0.000000e+00 : f32
    %181 = vector.broadcast %cst_66 : f32 to vector<12x12xf32>
    %182 = arith.cmpf ogt, %180, %181 : vector<12x12xf32>
    %cst_67 = arith.constant 2.000000e-01 : f32
    %183 = vector.broadcast %cst_67 : f32 to vector<12x12xf32>
    %184 = arith.mulf %183, %180 : vector<12x12xf32>
    %185 = arith.select %182, %180, %184 : vector<12x12xi1>, vector<12x12xf32>
    %186 = arith.addf %185, %0 : vector<12x12xf32>
    %cst_68 = arith.constant dense<0xFF800000> : vector<12xf32>
    %187 = vector.multi_reduction <maximumf>, %186, %cst_68 [1] : vector<12x12xf32> to vector<12xf32>
    %188 = vector.shape_cast %187 : vector<12xf32> to vector<12x1xf32>
    %189 = vector.broadcast %188 : vector<12x1xf32> to vector<12x12xf32>
    %190 = arith.subf %186, %189 : vector<12x12xf32>
    %191 = math.exp %190 : vector<12x12xf32>
    %cst_69 = arith.constant dense<0.000000e+00> : vector<12xf32>
    %192 = vector.multi_reduction <add>, %191, %cst_69 [1] : vector<12x12xf32> to vector<12xf32>
    %193 = vector.shape_cast %192 : vector<12xf32> to vector<12x1xf32>
    %194 = tpu.reciprocal %193 {approx = true} : vector<12x1xf32> -> vector<12x1xf32>
    %195 = vector.broadcast %194 : vector<12x1xf32> to vector<12x12xf32>
    %196 = arith.mulf %191, %195 : vector<12x12xf32>
    %197 = arith.truncf %196 : vector<12x12xf32> to vector<12x12xbf16>
    %198 = arith.truncf %175 : vector<12x16xf32> to vector<12x16xbf16>
    %cst_70 = arith.constant dense<0.000000e+00> : vector<12x16xf32>
    %199 = tpu.matmul %197, %198, %cst_70 {dimension_numbers = #tpu.dot_dimension_numbers<[1], [0], [0], [1], [0, 0, 1, 1], [], []>} : vector<12x12xbf16>, vector<12x16xbf16>, vector<12x16xf32> -> vector<12x16xf32>
    %200 = vector.extract_strided_slice %139 {offsets = [0, 16], sizes = [12, 16], strides = [1, 1]} : vector<12x64xf32> to vector<12x16xf32>
    %201 = arith.addf %199, %200 : vector<12x16xf32>
    %202 = arith.addf %174, %201 : vector<12x16xf32>
    %203 = vector.extract_strided_slice %134 {offsets = [0, 32], sizes = [12, 16], strides = [1, 1]} : vector<12x64xf32> to vector<12x16xf32>
    %204 = vector.extract_strided_slice %145 {offsets = [0, 2], sizes = [12, 1], strides = [1, 1]} : vector<12x8xf32> to vector<12x1xf32>
    %205 = vector.extract_strided_slice %147 {offsets = [6, 0], sizes = [1, 12], strides = [1, 1]} : vector<8x12xf32> to vector<1x12xf32>
    %206 = vector.broadcast %204 : vector<12x1xf32> to vector<12x12xf32>
    %207 = vector.broadcast %205 : vector<1x12xf32> to vector<12x12xf32>
    %208 = arith.addf %206, %207 : vector<12x12xf32>
    %cst_71 = arith.constant 0.000000e+00 : f32
    %209 = vector.broadcast %cst_71 : f32 to vector<12x12xf32>
    %210 = arith.cmpf ogt, %208, %209 : vector<12x12xf32>
    %cst_72 = arith.constant 2.000000e-01 : f32
    %211 = vector.broadcast %cst_72 : f32 to vector<12x12xf32>
    %212 = arith.mulf %211, %208 : vector<12x12xf32>
    %213 = arith.select %210, %208, %212 : vector<12x12xi1>, vector<12x12xf32>
    %214 = arith.addf %213, %0 : vector<12x12xf32>
    %cst_73 = arith.constant dense<0xFF800000> : vector<12xf32>
    %215 = vector.multi_reduction <maximumf>, %214, %cst_73 [1] : vector<12x12xf32> to vector<12xf32>
    %216 = vector.shape_cast %215 : vector<12xf32> to vector<12x1xf32>
    %217 = vector.broadcast %216 : vector<12x1xf32> to vector<12x12xf32>
    %218 = arith.subf %214, %217 : vector<12x12xf32>
    %219 = math.exp %218 : vector<12x12xf32>
    %cst_74 = arith.constant dense<0.000000e+00> : vector<12xf32>
    %220 = vector.multi_reduction <add>, %219, %cst_74 [1] : vector<12x12xf32> to vector<12xf32>
    %221 = vector.shape_cast %220 : vector<12xf32> to vector<12x1xf32>
    %222 = tpu.reciprocal %221 {approx = true} : vector<12x1xf32> -> vector<12x1xf32>
    %223 = vector.broadcast %222 : vector<12x1xf32> to vector<12x12xf32>
    %224 = arith.mulf %219, %223 : vector<12x12xf32>
    %225 = arith.truncf %224 : vector<12x12xf32> to vector<12x12xbf16>
    %226 = arith.truncf %203 : vector<12x16xf32> to vector<12x16xbf16>
    %cst_75 = arith.constant dense<0.000000e+00> : vector<12x16xf32>
    %227 = tpu.matmul %225, %226, %cst_75 {dimension_numbers = #tpu.dot_dimension_numbers<[1], [0], [0], [1], [0, 0, 1, 1], [], []>} : vector<12x12xbf16>, vector<12x16xbf16>, vector<12x16xf32> -> vector<12x16xf32>
    %228 = vector.extract_strided_slice %139 {offsets = [0, 32], sizes = [12, 16], strides = [1, 1]} : vector<12x64xf32> to vector<12x16xf32>
    %229 = arith.addf %227, %228 : vector<12x16xf32>
    %230 = arith.addf %202, %229 : vector<12x16xf32>
    %231 = vector.extract_strided_slice %134 {offsets = [0, 48], sizes = [12, 16], strides = [1, 1]} : vector<12x64xf32> to vector<12x16xf32>
    %232 = vector.extract_strided_slice %145 {offsets = [0, 3], sizes = [12, 1], strides = [1, 1]} : vector<12x8xf32> to vector<12x1xf32>
    %233 = vector.extract_strided_slice %147 {offsets = [7, 0], sizes = [1, 12], strides = [1, 1]} : vector<8x12xf32> to vector<1x12xf32>
    %234 = vector.broadcast %232 : vector<12x1xf32> to vector<12x12xf32>
    %235 = vector.broadcast %233 : vector<1x12xf32> to vector<12x12xf32>
    %236 = arith.addf %234, %235 : vector<12x12xf32>
    %cst_76 = arith.constant 0.000000e+00 : f32
    %237 = vector.broadcast %cst_76 : f32 to vector<12x12xf32>
    %238 = arith.cmpf ogt, %236, %237 : vector<12x12xf32>
    %cst_77 = arith.constant 2.000000e-01 : f32
    %239 = vector.broadcast %cst_77 : f32 to vector<12x12xf32>
    %240 = arith.mulf %239, %236 : vector<12x12xf32>
    %241 = arith.select %238, %236, %240 : vector<12x12xi1>, vector<12x12xf32>
    %242 = arith.addf %241, %0 : vector<12x12xf32>
    %cst_78 = arith.constant dense<0xFF800000> : vector<12xf32>
    %243 = vector.multi_reduction <maximumf>, %242, %cst_78 [1] : vector<12x12xf32> to vector<12xf32>
    %244 = vector.shape_cast %243 : vector<12xf32> to vector<12x1xf32>
    %245 = vector.broadcast %244 : vector<12x1xf32> to vector<12x12xf32>
    %246 = arith.subf %242, %245 : vector<12x12xf32>
    %247 = math.exp %246 : vector<12x12xf32>
    %cst_79 = arith.constant dense<0.000000e+00> : vector<12xf32>
    %248 = vector.multi_reduction <add>, %247, %cst_79 [1] : vector<12x12xf32> to vector<12xf32>
    %249 = vector.shape_cast %248 : vector<12xf32> to vector<12x1xf32>
    %250 = tpu.reciprocal %249 {approx = true} : vector<12x1xf32> -> vector<12x1xf32>
    %251 = vector.broadcast %250 : vector<12x1xf32> to vector<12x12xf32>
    %252 = arith.mulf %247, %251 : vector<12x12xf32>
    %253 = arith.truncf %252 : vector<12x12xf32> to vector<12x12xbf16>
    %254 = arith.truncf %231 : vector<12x16xf32> to vector<12x16xbf16>
    %cst_80 = arith.constant dense<0.000000e+00> : vector<12x16xf32>
    %255 = tpu.matmul %253, %254, %cst_80 {dimension_numbers = #tpu.dot_dimension_numbers<[1], [0], [0], [1], [0, 0, 1, 1], [], []>} : vector<12x12xbf16>, vector<12x16xbf16>, vector<12x16xf32> -> vector<12x16xf32>
    %256 = vector.extract_strided_slice %139 {offsets = [0, 48], sizes = [12, 16], strides = [1, 1]} : vector<12x64xf32> to vector<12x16xf32>
    %257 = arith.addf %255, %256 : vector<12x16xf32>
    %258 = arith.addf %230, %257 : vector<12x16xf32>
    %cst_81 = arith.constant 2.500000e-01 : f32
    %259 = vector.broadcast %cst_81 : f32 to vector<12x16xf32>
    %260 = arith.mulf %258, %259 : vector<12x16xf32>
    %261 = vector.extract_strided_slice %115 {offsets = [0, 16], sizes = [12, 16], strides = [1, 1]} : vector<12x32xf32> to vector<12x16xf32>
    %262 = arith.addf %260, %261 : vector<12x16xf32>
    %cst_82 = arith.constant 0.000000e+00 : f32
    %263 = vector.broadcast %cst_82 : f32 to vector<12x16xf32>
    %264 = arith.maximumf %262, %263 : vector<12x16xf32>
    %c0_83 = arith.constant 0 : index
    %c1024 = arith.constant 1024 : index
    %265 = vector.load %arg4[%c0_83, %c1024] : memref<12x1792xf32, #tpu.memory_space<vmem>>, vector<12x1xf32>
    %266 = vector.broadcast %265 : vector<12x1xf32> to vector<12x16xf32>
    %267 = arith.mulf %264, %266 : vector<12x16xf32>
    %c0_84 = arith.constant 0 : index
    %c1025 = arith.constant 1025 : index
    %268 = vector.load %arg4[%c0_84, %c1025] : memref<12x1792xf32, #tpu.memory_space<vmem>>, vector<12x1xf32>
    %269 = vector.broadcast %268 : vector<12x1xf32> to vector<12x16xf32>
    %270 = arith.addf %267, %269 : vector<12x16xf32>
    %271 = arith.truncf %270 : vector<12x16xf32> to vector<12x16xbf16>
    %c480 = arith.constant 480 : index
    %c0_85 = arith.constant 0 : index
    %272 = vector.load %arg3[%c480, %c0_85] : memref<528x256xbf16, #tpu.memory_space<vmem>>, vector<16x32xbf16>
    %cst_86 = arith.constant dense<0.000000e+00> : vector<12x32xf32>
    %273 = tpu.matmul %271, %272, %cst_86 {dimension_numbers = #tpu.dot_dimension_numbers<[1], [0], [0], [1], [0, 0, 1, 1], [], []>} : vector<12x16xbf16>, vector<16x32xbf16>, vector<12x32xf32> -> vector<12x32xf32>
    %c0_87 = arith.constant 0 : index
    %c1152 = arith.constant 1152 : index
    %274 = vector.load %arg4[%c0_87, %c1152] : memref<12x1792xf32, #tpu.memory_space<vmem>>, vector<1x32xf32>
    %275 = vector.broadcast %274 : vector<1x32xf32> to vector<12x32xf32>
    %276 = arith.addf %273, %275 : vector<12x32xf32>
    %cst_88 = arith.constant 0.000000e+00 : f32
    %277 = vector.broadcast %cst_88 : f32 to vector<12x32xf32>
    %278 = arith.maximumf %276, %277 : vector<12x32xf32>
    %c0_89 = arith.constant 0 : index
    %c1280 = arith.constant 1280 : index
    %279 = vector.load %arg4[%c0_89, %c1280] : memref<12x1792xf32, #tpu.memory_space<vmem>>, vector<1x32xf32>
    %280 = vector.broadcast %279 : vector<1x32xf32> to vector<12x32xf32>
    %281 = arith.mulf %278, %280 : vector<12x32xf32>
    %c0_90 = arith.constant 0 : index
    %c1408 = arith.constant 1408 : index
    %282 = vector.load %arg4[%c0_90, %c1408] : memref<12x1792xf32, #tpu.memory_space<vmem>>, vector<1x32xf32>
    %283 = vector.broadcast %282 : vector<1x32xf32> to vector<12x32xf32>
    %284 = arith.addf %281, %283 : vector<12x32xf32>
    %285 = arith.truncf %284 : vector<12x32xf32> to vector<12x32xbf16>
    %c496 = arith.constant 496 : index
    %c0_91 = arith.constant 0 : index
    %286 = vector.load %arg3[%c496, %c0_91] : memref<528x256xbf16, #tpu.memory_space<vmem>>, vector<32x4xbf16>
    %cst_92 = arith.constant dense<0.000000e+00> : vector<12x4xf32>
    %287 = tpu.matmul %285, %286, %cst_92 {dimension_numbers = #tpu.dot_dimension_numbers<[1], [0], [0], [1], [0, 0, 1, 1], [], []>} : vector<12x32xbf16>, vector<32x4xbf16>, vector<12x4xf32> -> vector<12x4xf32>
    %c0_93 = arith.constant 0 : index
    %c1536 = arith.constant 1536 : index
    %288 = vector.load %arg4[%c0_93, %c1536] : memref<12x1792xf32, #tpu.memory_space<vmem>>, vector<1x4xf32>
    %289 = vector.broadcast %288 : vector<1x4xf32> to vector<12x4xf32>
    %290 = arith.addf %287, %289 : vector<12x4xf32>
    %c0_94 = arith.constant 0 : index
    %c0_95 = arith.constant 0 : index
    %c0_96 = arith.constant 0 : index
    %291 = vector.load %arg5[%c0_94, %c0_95, %c0_96] : memref<1x12x4xf32, #tpu.memory_space<vmem>>, vector<1x12x4xf32>
    %292 = vector.shape_cast %291 : vector<1x12x4xf32> to vector<12x4xf32>
    %293 = vector.shape_cast %290 : vector<12x4xf32> to vector<1x12x4xf32>
    tpu.vector_store %arg5[%c0_94, %c0_95, %c0_96], %293 {strides = array<i32>} : memref<1x12x4xf32, #tpu.memory_space<vmem>>, vector<1x12x4xf32>,
    return
  }
  func.func @transform_0(%arg0: i32) -> (i32, i32, i32) {
    %c0_i32 = arith.constant 0 : i32
    %c0_i32_0 = arith.constant 0 : i32
    %c0_i32_1 = arith.constant 0 : i32
    return %arg0, %c0_i32, %c0_i32_0 : i32, i32, i32
  }
  func.func @transform_1(%arg0: i32) -> (i32, i32) {
    %c0_i32 = arith.constant 0 : i32
    %c0_i32_0 = arith.constant 0 : i32
    %c0_i32_1 = arith.constant 0 : i32
    return %c0_i32, %c0_i32_0 : i32, i32
  }
  func.func @transform_2(%arg0: i32) -> (i32, i32) {
    %c0_i32 = arith.constant 0 : i32
    %c0_i32_0 = arith.constant 0 : i32
    %c0_i32_1 = arith.constant 0 : i32
    return %c0_i32, %c0_i32_0 : i32, i32
  }
  func.func @transform_3(%arg0: i32) -> (i32, i32) {
    %c0_i32 = arith.constant 0 : i32
    %c0_i32_0 = arith.constant 0 : i32
    %c0_i32_1 = arith.constant 0 : i32
    return %c0_i32, %c0_i32_0 : i32, i32
  }
  func.func @transform_4(%arg0: i32) -> (i32, i32, i32) {
    %c0_i32 = arith.constant 0 : i32
    %c0_i32_0 = arith.constant 0 : i32
    %c0_i32_1 = arith.constant 0 : i32
    return %arg0, %c0_i32, %c0_i32_0 : i32, i32, i32
  }
}

</mosaic_0001>

<llo_original>
// kernel: tpu_custom_call.1
$region0: #{tpu_custom_call.1}
  #allocation0 [shape = 'u32[]', space=smem, size = 0x4, offset = 0x4, fixed_abs, tag = 'smem constant byte address 0x4 - core index']
  #allocation1 [shape = 'u32[144,128]{1,0:T(1,128)}', space=vmem, size = 0x12000, scoped, tag = 'internal scratch']
  #allocation2 [shape = 'f32[12,32]{1,0:T(8,128)}', space=vmem, size = 0x2000, scoped, tag = 'scratch operand']
  %s0 = inlined_call_operand.vmem [shape: f32[2,12,32], index: 0, kind: input, shape index: {}]
  %s1 = inlined_call_operand.vmem [shape: f32[12,12], index: 1, kind: input, shape index: {}]
  %s2 = inlined_call_operand.hbm [shape: bf16[528,256], index: 2, kind: input, shape index: {}]
  %s3 = inlined_call_operand.hbm [shape: f32[12,1792], index: 3, kind: input, shape index: {}]
  %s4 = inlined_call_operand.vmem [shape: f32[2,12,4], index: 4, kind: output, shape index: {}]
  %s5 = sld [smem:[#allocation0]]
  $region57: #{tpu_custom_call.1} parent=0
    _
  %s7 = ssub.s32 1, %s5
  %s8 = scalar_select 0, %s7, %s5
  $region1: #{tpu_custom_call.1} parent=0
    #allocation3 [shape = 'u8[270336]{0}', space=vmem, size = 0x42000, scoped, tag = 'input window, operand 2, single buffered']
    #allocation4 [shape = 's32[2]{0}', space=sflag, size = 0x8, scoped, tag = 'scoped memory for tpu_custom_call.1']
    #allocation5 [shape = 'u8[114688]{0}', space=vmem, size = 0x1c000, scoped, tag = 'input window, operand 3, single buffered']
    #allocation6 [shape = 's32[1]{0}', space=sflag, size = 0x4, scoped, tag = 'scoped memory for tpu_custom_call.1']
    %9 = vsyncpa [#allocation4], 0
    %10 = vsyncpa [#allocation6], 0
    loop: start=0, step=1, limit=4
    $region2: #{tpu_custom_call.1} parent=1 // loop_pre_header
      _
    $region3: #{tpu_custom_call.1} parent=1 // loop_header
      %s12 = sphi 0, %s16
      %p13 = scmp.ge.s32.totalorder %s12, 4
      %s22 = sphi 0, %s24
      %s25 = sphi 0, %s22
      %s26 = sphi 0, %s25
      %s42 = sphi 0, %s26
      %s46 = sphi 0, %s46
      %s48 = sphi 0, %s46
      %s49 = sphi 0, %s48
      %s63 = sphi 0, %s49
      %s67 = sphi 0, %s67
      %s69 = sphi 0, %s67
      %s70 = sphi 0, %s69
      %s84 = sphi 0, %s70
      %s88 = sphi 0, %s88
      %s90 = sphi 0, %s88
      %s91 = sphi 0, %s90
      %s105 = sphi 0, %s91
      %s111 = sphi 0, %s113
      %s114 = sphi 0, %s111
      %s115 = sphi 0, %s114
      %s131 = sphi 0, %s115
    $region4: #{tpu_custom_call.1} parent=1 // loop_header_branch
      %15 = sbr.rel (%p13) target = $region8
    $region5: #{tpu_custom_call.1} parent=1 // loop_body
      %s17 = ssub.s32 %s12, 1
      %s18 = ssub.s32 %s12, 2
      %s19 = sadd.s32 %s12, 1
      %s20 = ssub.s32 %s12, %s19
      %p21 = scmp.eq.s32.totalorder %s20, 0
      %s23 = sadd.s32 %s22, 1
      %s24 = scalar_select %p21, %s22, %s23
      %p27 = pneg %p21
      %p28 = scmp.eq.s32.totalorder %s12, 1
      %p29 = por %p27, %p28
      %p30 = scmp.ne.s32.totalorder %s22, %s25
      %p31 = scmp.eq.s32.totalorder %s12, 0
      %p32 = por %p30, %p31
      %p33 = scmp.ne.s32.totalorder %s22, %s25
      %p34 = scmp.eq.s32.totalorder %s17, 1
      %p35 = por %p33, %p34
      %p36 = scmp.ne.s32.totalorder %s25, %s26
      %p37 = scmp.eq.s32.totalorder %s17, 0
      %p38 = por %p36, %p37
      %p39 = scmp.ne.s32.totalorder %s25, %s26
      %p40 = scmp.eq.s32.totalorder %s18, 1
      %p41 = por %p39, %p40
      %p43 = scmp.ne.s32.totalorder %s26, %s42
      %p44 = scmp.eq.s32.totalorder %s18, 0
      %p45 = por %p43, %p44
      %s47 = sadd.s32 %s46, 1
      %p50 = scmp.eq.s32.totalorder %s12, 1
      %p51 = scmp.ne.s32.totalorder %s46, %s48
      %p52 = scmp.eq.s32.totalorder %s12, 0
      %p53 = por %p51, %p52
      %p54 = scmp.ne.s32.totalorder %s46, %s48
      %p55 = scmp.eq.s32.totalorder %s17, 1
      %p56 = por %p54, %p55
      %p57 = scmp.ne.s32.totalorder %s48, %s49
      %p58 = scmp.eq.s32.totalorder %s17, 0
      %p59 = por %p57, %p58
      %p60 = scmp.ne.s32.totalorder %s48, %s49
      %p61 = scmp.eq.s32.totalorder %s18, 1
      %p62 = por %p60, %p61
      %p64 = scmp.ne.s32.totalorder %s49, %s63
      %p65 = scmp.eq.s32.totalorder %s18, 0
      %p66 = por %p64, %p65
      %s68 = sadd.s32 %s67, 1
      %p71 = scmp.eq.s32.totalorder %s12, 1
      %p72 = scmp.ne.s32.totalorder %s67, %s69
      %p73 = scmp.eq.s32.totalorder %s12, 0
      %p74 = por %p72, %p73
      %p75 = scmp.ne.s32.totalorder %s67, %s69
      %p76 = scmp.eq.s32.totalorder %s17, 1
      %p77 = por %p75, %p76
      %p78 = scmp.ne.s32.totalorder %s69, %s70
      %p79 = scmp.eq.s32.totalorder %s17, 0
      %p80 = por %p78, %p79
      %p81 = scmp.ne.s32.totalorder %s69, %s70
      %p82 = scmp.eq.s32.totalorder %s18, 1
      %p83 = por %p81, %p82
      %p85 = scmp.ne.s32.totalorder %s70, %s84
      %p86 = scmp.eq.s32.totalorder %s18, 0
      %p87 = por %p85, %p86
      %s89 = sadd.s32 %s88, 1
      %p92 = scmp.eq.s32.totalorder %s12, 1
      %p93 = scmp.ne.s32.totalorder %s88, %s90
      %p94 = scmp.eq.s32.totalorder %s12, 0
      %p95 = por %p93, %p94
      %p96 = scmp.ne.s32.totalorder %s88, %s90
      %p97 = scmp.eq.s32.totalorder %s17, 1
      %p98 = por %p96, %p97
      %p99 = scmp.ne.s32.totalorder %s90, %s91
      %p100 = scmp.eq.s32.totalorder %s17, 0
      %p101 = por %p99, %p100
      %p102 = scmp.ne.s32.totalorder %s90, %s91
      %p103 = scmp.eq.s32.totalorder %s18, 1
      %p104 = por %p102, %p103
      %p106 = scmp.ne.s32.totalorder %s91, %s105
      %p107 = scmp.eq.s32.totalorder %s18, 0
      %p108 = por %p106, %p107
      %s109 = ssub.s32 %s12, %s19
      %p110 = scmp.eq.s32.totalorder %s109, 0
      %s112 = sadd.s32 %s111, 1
      %s113 = scalar_select %p110, %s111, %s112
      %p116 = pneg %p110
      %p117 = scmp.eq.s32.totalorder %s12, 1
      %p118 = por %p116, %p117
      %p119 = scmp.ne.s32.totalorder %s111, %s114
      %p120 = scmp.eq.s32.totalorder %s12, 0
      %p121 = por %p119, %p120
      %p122 = scmp.ne.s32.totalorder %s111, %s114
      %p123 = scmp.eq.s32.totalorder %s17, 1
      %p124 = por %p122, %p123
      %p125 = scmp.ne.s32.totalorder %s114, %s115
      %p126 = scmp.eq.s32.totalorder %s17, 0
      %p127 = por %p125, %p126
      %p128 = scmp.ne.s32.totalorder %s114, %s115
      %p129 = scmp.eq.s32.totalorder %s18, 1
      %p130 = por %p128, %p129
      %p132 = scmp.ne.s32.totalorder %s115, %s131
      %p133 = scmp.eq.s32.totalorder %s18, 0
      %p134 = por %p132, %p133
      %p135 = scmp.le.s32.totalorder 1, %s12
      %p136 = scmp.lt.s32.totalorder %s12, 3
      %p137 = pnand %p135, %p136
      %p138 = pneg %p137
      // Predicated region
      $region9: #{tpu_custom_call.1} parent=5 // pred_check
        _
      $region10: #{tpu_custom_call.1} parent=5 // pred_check_branch
        %140 = sbr.rel (%p137) target = $region12
      $region11: #{tpu_custom_call.1} parent=5 // pred_region
        %s141 = ssub.s32 %s12, 1
        // Predicated region
        $region13: #{tpu_custom_call.1} parent=11 // pred_check
          %p142 = pneg %p59
        $region14: #{tpu_custom_call.1} parent=11 // pred_check_branch
          %144 = sbr.rel (%p142) target = $region16
        $region15: #{tpu_custom_call.1} parent=11 // pred_region
          _
        $region16: #{tpu_custom_call.1} parent=11 // pred_fallthru
          _
        // Predicated region
        $region17: #{tpu_custom_call.1} parent=11 // pred_check
          %p145 = pneg %p80
        $region18: #{tpu_custom_call.1} parent=11 // pred_check_branch
          %147 = sbr.rel (%p145) target = $region20
        $region19: #{tpu_custom_call.1} parent=11 // pred_region
          %s149 = ssub.s32 8448, 8448
          %150 = vsyncadd [#allocation4], %s149
          %s151 = sshll.u32 [#allocation3], 4
          %s152 = int_to_ptr.vmem [resolvable:$true] %s151
          %157 = dma.hbm_to_vmem [thread:$0]  %s2, 8448, %s152, [#allocation4], 128, 128, 8
        $region20: #{tpu_custom_call.1} parent=11 // pred_fallthru
          _
        // Predicated region
        $region21: #{tpu_custom_call.1} parent=11 // pred_check
          %p158 = pneg %p101
        $region22: #{tpu_custom_call.1} parent=11 // pred_check_branch
          %160 = sbr.rel (%p158) target = $region24
        $region23: #{tpu_custom_call.1} parent=11 // pred_region
          %s162 = ssub.s32 3584, 3584
          %163 = vsyncadd [#allocation6], %s162
          %s164 = sshll.u32 [#allocation5], 4
          %s165 = int_to_ptr.vmem [resolvable:$true] %s164
          %170 = dma.hbm_to_vmem [thread:$0]  %s3, 3584, %s165, [#allocation6], 1792, 1792, 112
        $region24: #{tpu_custom_call.1} parent=11 // pred_fallthru
          _
      $region12: #{tpu_custom_call.1} parent=5 // pred_fallthru
        _
      %p171 = scmp.lt.s32.totalorder %s12, 2
      // Predicated region
      $region25: #{tpu_custom_call.1} parent=5 // pred_check
        %p172 = pneg %p171
      $region26: #{tpu_custom_call.1} parent=5 // pred_check_branch
        %174 = sbr.rel (%p172) target = $region28
      $region27: #{tpu_custom_call.1} parent=5 // pred_region
        // Predicated region
        $region29: #{tpu_custom_call.1} parent=27 // pred_check
          %p175 = pneg %p32
        $region30: #{tpu_custom_call.1} parent=27 // pred_check_branch
          %177 = sbr.rel (%p175) target = $region32
        $region31: #{tpu_custom_call.1} parent=27 // pred_region
          %p178 = scmp.lt.s32.totalorder %s12, 1
          %s179 = scalar_select %p178, %s12, 1
          %s180 = smul.addr %s179, 2
          %s181 = smul.addr %s180, 8
          %s182 = scalar_lea.vmem %s0, %s181
        $region32: #{tpu_custom_call.1} parent=27 // pred_fallthru
          _
      $region28: #{tpu_custom_call.1} parent=5 // pred_fallthru
        _
      %p183 = scmp.le.s32.totalorder 1, %s12
      %p184 = scmp.lt.s32.totalorder %s12, 3
      %p185 = pnand %p183, %p184
      %p186 = pneg %p185
      // Predicated region
      $region33: #{tpu_custom_call.1} parent=5 // pred_check
        _
      $region34: #{tpu_custom_call.1} parent=5 // pred_check_branch
        %188 = sbr.rel (%p185) target = $region36
      $region35: #{tpu_custom_call.1} parent=5 // pred_region
        %s189 = ssub.s32 %s12, 1
        // Predicated region
        $region37: #{tpu_custom_call.1} parent=35 // pred_check
          %p190 = pneg %p80
        $region38: #{tpu_custom_call.1} parent=35 // pred_check_branch
          %192 = sbr.rel (%p190) target = $region40
        $region39: #{tpu_custom_call.1} parent=35 // pred_region
          %193 = dma.done [#allocation4], 8448
        $region40: #{tpu_custom_call.1} parent=35 // pred_fallthru
          _
        // Predicated region
        $region41: #{tpu_custom_call.1} parent=35 // pred_check
          %p194 = pneg %p101
        $region42: #{tpu_custom_call.1} parent=35 // pred_check_branch
          %196 = sbr.rel (%p194) target = $region44
        $region43: #{tpu_custom_call.1} parent=35 // pred_region
          %197 = dma.done [#allocation6], 3584
        $region44: #{tpu_custom_call.1} parent=35 // pred_fallthru
          _
        %p198 = scmp.lt.s32.totalorder %s17, 1
        %s199 = scalar_select %p198, %s17, 1
        %s200 = smul.addr %s199, 2
        %s201 = smul.addr %s200, 8
        %s202 = scalar_lea.vmem %s0, %s201
        %p203 = pneg %p38
        %p204 = pneg %p35
        %p205 = pneg %p59
        %p206 = pneg %p56
        %p207 = pneg %p80
        %p208 = pneg %p77
        %p209 = pneg %p101
        %p210 = pneg %p98
        %p211 = pneg %p127
        %p212 = pneg %p124
        %p213 = scmp.lt.s32.totalorder %s17, 1
        %s214 = scalar_select %p213, %s17, 1
        %s215 = smul.addr %s214, 2
        %s216 = smul.addr %s215, 8
        %s217 = scalar_lea.vmem %s4, %s216
        %p218 = scmp.lt.s32.totalorder %s17, 1
        %s219 = scalar_select %p218, %s17, 1
        %s220 = smul.addr %s219, 2
        %s221 = smul.addr %s220, 8
        %s222 = scalar_lea.vmem %s0, %s221
        %p223 = scmp.lt.s32.totalorder %s17, 1
        %s224 = scalar_select %p223, %s17, 1
        %s225 = smul.addr %s224, 2
        %s226 = smul.addr %s225, 8
        %s227 = scalar_lea.vmem %s4, %s226
        %v229 = vld [vmem:[%s1] sm:$0xff]
        %v230 = vld [vmem:[%s1 + $0x8] sm:$0xf]
        %v231 = vld [vmem:[%s222] sm:$0xff]
        %v232 = vld [vmem:[%s222 + $0x8] sm:$0xf]
        %v233 = vpack.c.bf16 %v232, %v231
        %v234 = vld [vmem:[#allocation3] sm:$0xff]
        %v235 = vld [vmem:[#allocation3 + $0x8] sm:$0xff]
        %v236 = vld [vmem:[#allocation3 + $0x10] sm:$0xff]
        %v237 = vld [vmem:[#allocation3 + $0x18] sm:$0xff]
        %v238 = vld [vmem:[#allocation5] ss:$8 sm:$0x3]
        %v240 = vlaneseq
        %v241 = vshrl.u32 %v240, 7
        %v242 = vsub.s32 0, %v241
        %v243 = vrot.slane %v238, %v242
        %v244 = vlaneseq
        %v245 = vshrl.u32 %v244, 7
        %v246 = vsub.s32 1, %v245
        %v247 = vrot.slane %v238, %v246
        %v254 = vunpack.c.l.b16 %v234
        %v255 = vunpack.c.h.b16 %v234
        %v256 = vunpack.c.l.b16 %v235
        %v257 = vunpack.c.h.b16 %v235
        %v258 = vunpack.c.l.b16 %v236
        %v259 = vunpack.c.h.b16 %v236
        %v260 = vunpack.c.l.b16 %v237
        %v261 = vunpack.c.h.b16 %v237
        %v262 = vpack.c.b16 %v256, %v254
        %v263 = vpack.c.b16 %v257, %v255
        %v264 = vpack.c.b16 %v260, %v258
        %v265 = vpack.c.b16 %v261, %v259
        %vm270 = vcmask 261120
        %v272 = vsel %vm270, %v233, 0
        %274 = vmatprep.subr.bf16.mxu0 0
        %275 = vmatpush1.bf16.msra.mxu0 0
        %276 = vmatprep.subr.bf16.mxu0 0
        %277 = vmatpush1.bf16.msra.mxu0 0
        %278 = vmatprep.subr.bf16.mxu0 0
        %279 = vmatpush1.bf16.msra.mxu0 0
        %280 = vmatprep.subr.bf16.mxu0 0
        %281 = vmatpush1.bf16.msra.mxu0 0
        %282 = vmatprep.subr.bf16.mxu0 0
        %283 = vmatpush1.bf16.msra.mxu0 0
        %284 = vmatprep.subr.bf16.mxu0 0
        %285 = vmatpush1.bf16.msra.mxu0 0
        %286 = vmatprep.subr.bf16.mxu0 %v265
        %287 = vmatpush1.bf16.msra.mxu0 %v264
        %288 = vmatprep.subr.bf16.mxu0 %v263
        %289 = vmatpush1.bf16.msra.mxu0 %v262
        %290 = vmatprep.subr.bf16.mxu0 0
        %291 = vmatpush2.bf16.msra.mxu0 0
        %292 = vmatprep.subr.bf16.mxu0 0
        %293 = vmatpush2.bf16.msra.mxu0 0
        %294 = vmatprep.subr.bf16.mxu0 0
        %295 = vmatpush2.bf16.msra.mxu0 0
        %296 = vmatprep.subr.bf16.mxu0 0
        %297 = vmatpush2.bf16.msra.mxu0 0
        %298 = vmatprep.subr.bf16.mxu0 0
        %299 = vmatpush2.bf16.msra.mxu0 0
        %300 = vmatprep.subr.bf16.mxu0 0
        %301 = vmatpush2.bf16.msra.mxu0 0
        %302 = vmatprep.subr.bf16.mxu0 0
        %303 = vmatpush2.bf16.msra.mxu0 0
        %304 = vmatprep.subr.bf16.mxu0 0
        %305 = vmatpush2.bf16.msra.mxu0 0
        %306 = vmatprep.mubr.bf16.mxu0 0
        %307 = vmatmul.mubr.bf16.gmra.mxu0 %v272
        %v308 = vpop.f32.mrf.mxu0
        %v309 = vadd.f32 %v243, %v308
        %v310 = vpop.f32.mrf.mxu0
        %v311 = vadd.f32 %v247, %v310
        %v312 = vpop.f32.mrf.mxu0
        %v313 = vadd.f32 %v243, %v312
        %v314 = vpop.f32.mrf.mxu0
        %v315 = vadd.f32 %v247, %v314
        %316 = vdwg.mxu0
        %v317 = vxor.u32 %v311, 2147483648
        %v318 = vxor.u32 %v315, 2147483648
        %v319 = vmul.f32 %v317, 1.442695
        %v320 = vpow.pop %v319
        %v321 = vmul.f32 %v318, 1.442695
        %v322 = vpow.pop %v321
        %v323 = vadd.f32 %v320, 1.0
        %v324 = vadd.f32 %v322, 1.0
        %v325 = vrcp.pop %v323
        %v326 = vmul.f32 1.0, %v325
        %v327 = vrcp.pop %v324
        %v328 = vmul.f32 1.0, %v327
        %v329 = vadd.f32 %v309, %v326
        %v330 = vadd.f32 %v313, %v328
        %v331 = vmax.f32 %v329, 0.0
        %v332 = vmax.f32 %v330, 0.0
        %v333 = vpack.c.bf16 %v332, %v331
        %v334 = vld [vmem:[#allocation3 + $0x20] sm:$0xf]
        %v335 = vld [vmem:[#allocation3 + $0x28] sm:$0xf]
        %v336 = vld [vmem:[#allocation3 + $0x30] sm:$0xf]
        %v337 = vld [vmem:[#allocation3 + $0x38] sm:$0xf]
        %v338 = vld [vmem:[#allocation3 + $0x40] sm:$0xf]
        %v339 = vld [vmem:[#allocation3 + $0x48] sm:$0xf]
        %v340 = vld [vmem:[#allocation3 + $0x50] sm:$0xf]
        %v341 = vld [vmem:[#allocation3 + $0x58] sm:$0xf]
        %v342 = vld [vmem:[#allocation3 + $0x60] sm:$0xf]
        %v343 = vld [vmem:[#allocation3 + $0x68] sm:$0xf]
        %v344 = vld [vmem:[#allocation3 + $0x70] sm:$0xf]
        %v345 = vld [vmem:[#allocation3 + $0x78] sm:$0xf]
        %v346 = vld [vmem:[#allocation3 + $0x80] sm:$0xf]
        %v347 = vld [vmem:[#allocation3 + $0x88] sm:$0xf]
        %v348 = vld [vmem:[#allocation3 + $0x90] sm:$0xf]
        %v349 = vld [vmem:[#allocation3 + $0x98] sm:$0xf]
        %v366 = vunpack.c.l.b16 %v334
        %v367 = vunpack.c.l.b16 %v335
        %v368 = vunpack.c.l.b16 %v336
        %v369 = vunpack.c.l.b16 %v337
        %v370 = vunpack.c.l.b16 %v338
        %v371 = vunpack.c.l.b16 %v339
        %v372 = vunpack.c.l.b16 %v340
        %v373 = vunpack.c.l.b16 %v341
        %v374 = vunpack.c.l.b16 %v342
        %v375 = vunpack.c.l.b16 %v343
        %v376 = vunpack.c.l.b16 %v344
        %v377 = vunpack.c.l.b16 %v345
        %v378 = vunpack.c.l.b16 %v346
        %v379 = vunpack.c.l.b16 %v347
        %v380 = vunpack.c.l.b16 %v348
        %v381 = vunpack.c.l.b16 %v349
        %v382 = vpack.c.b16 %v367, %v366
        %v383 = vpack.c.b16 %v369, %v368
        %v384 = vpack.c.b16 %v371, %v370
        %v385 = vpack.c.b16 %v373, %v372
        %v386 = vpack.c.b16 %v375, %v374
        %v387 = vpack.c.b16 %v377, %v376
        %v388 = vpack.c.b16 %v379, %v378
        %v389 = vpack.c.b16 %v381, %v380
        %398 = vmatprep.subr.bf16.mxu0 0
        %399 = vmatpush1.bf16.msra.mxu0 %v389
        %400 = vmatprep.subr.bf16.mxu0 0
        %401 = vmatpush1.bf16.msra.mxu0 %v388
        %402 = vmatprep.subr.bf16.mxu0 0
        %403 = vmatpush1.bf16.msra.mxu0 %v387
        %404 = vmatprep.subr.bf16.mxu0 0
        %405 = vmatpush1.bf16.msra.mxu0 %v386
        %406 = vmatprep.subr.bf16.mxu0 0
        %407 = vmatpush1.bf16.msra.mxu0 %v385
        %408 = vmatprep.subr.bf16.mxu0 0
        %409 = vmatpush1.bf16.msra.mxu0 %v384
        %410 = vmatprep.subr.bf16.mxu0 0
        %411 = vmatpush1.bf16.msra.mxu0 %v383
        %412 = vmatprep.subr.bf16.mxu0 0
        %413 = vmatpush1.bf16.msra.mxu0 %v382
        %414 = vmatprep.subr.bf16.mxu0 0
        %415 = vmatpush2.bf16.msra.mxu0 0
        %416 = vmatprep.subr.bf16.mxu0 0
        %417 = vmatpush2.bf16.msra.mxu0 0
        %418 = vmatprep.subr.bf16.mxu0 0
        %419 = vmatpush2.bf16.msra.mxu0 0
        %420 = vmatprep.subr.bf16.mxu0 0
        %421 = vmatpush2.bf16.msra.mxu0 0
        %422 = vmatprep.subr.bf16.mxu0 0
        %423 = vmatpush2.bf16.msra.mxu0 0
        %424 = vmatprep.subr.bf16.mxu0 0
        %425 = vmatpush2.bf16.msra.mxu0 0
        %426 = vmatprep.subr.bf16.mxu0 0
        %427 = vmatpush2.bf16.msra.mxu0 0
        %428 = vmatprep.subr.bf16.mxu0 0
        %429 = vmatpush2.bf16.msra.mxu0 0
        %430 = vmatprep.mubr.bf16.mxu0 0
        %431 = vmatmul.mubr.bf16.gmra.mxu0 %v333
        %v432 = vpop.f32.mrf.mxu0
        %v433 = vadd.f32 0.0, %v432
        %v434 = vpop.f32.mrf.mxu0
        %v435 = vpop.f32.mrf.mxu0
        %v436 = vadd.f32 0.0, %v435
        %v437 = vpop.f32.mrf.mxu0
        %438 = vdwg.mxu0
        %v439 = vld [vmem:[#allocation3 + $0xa0] sm:$0xf]
        %v440 = vld [vmem:[#allocation3 + $0xa8] sm:$0xf]
        %v441 = vld [vmem:[#allocation3 + $0xb0] sm:$0xf]
        %v442 = vld [vmem:[#allocation3 + $0xb8] sm:$0xf]
        %v443 = vld [vmem:[#allocation3 + $0xc0] sm:$0xf]
        %v444 = vld [vmem:[#allocation3 + $0xc8] sm:$0xf]
        %v445 = vld [vmem:[#allocation3 + $0xd0] sm:$0xf]
        %v446 = vld [vmem:[#allocation3 + $0xd8] sm:$0xf]
        %v447 = vld [vmem:[#allocation3 + $0xe0] sm:$0xf]
        %v448 = vld [vmem:[#allocation3 + $0xe8] sm:$0xf]
        %v449 = vld [vmem:[#allocation3 + $0xf0] sm:$0xf]
        %v450 = vld [vmem:[#allocation3 + $0xf8] sm:$0xf]
        %v451 = vld [vmem:[#allocation3 + $0x100] sm:$0xf]
        %v452 = vld [vmem:[#allocation3 + $0x108] sm:$0xf]
        %v453 = vld [vmem:[#allocation3 + $0x110] sm:$0xf]
        %v454 = vld [vmem:[#allocation3 + $0x118] sm:$0xf]
        %v455 = vld [vmem:[#allocation5 + $0x10] ss:$0 sm:$0xff]
        %v472 = vunpack.c.l.b16 %v439
        %v473 = vunpack.c.l.b16 %v440
        %v474 = vunpack.c.l.b16 %v441
        %v475 = vunpack.c.l.b16 %v442
        %v476 = vunpack.c.l.b16 %v443
        %v477 = vunpack.c.l.b16 %v444
        %v478 = vunpack.c.l.b16 %v445
        %v479 = vunpack.c.l.b16 %v446
        %v480 = vunpack.c.l.b16 %v447
        %v481 = vunpack.c.l.b16 %v448
        %v482 = vunpack.c.l.b16 %v449
        %v483 = vunpack.c.l.b16 %v450
        %v484 = vunpack.c.l.b16 %v451
        %v485 = vunpack.c.l.b16 %v452
        %v486 = vunpack.c.l.b16 %v453
        %v487 = vunpack.c.l.b16 %v454
        %v488 = vpack.c.b16 %v473, %v472
        %v489 = vpack.c.b16 %v475, %v474
        %v490 = vpack.c.b16 %v477, %v476
        %v491 = vpack.c.b16 %v479, %v478
        %v492 = vpack.c.b16 %v481, %v480
        %v493 = vpack.c.b16 %v483, %v482
        %v494 = vpack.c.b16 %v485, %v484
        %v495 = vpack.c.b16 %v487, %v486
        %504 = vmatprep.subr.bf16.mxu0 0
        %505 = vmatpush1.bf16.msra.mxu0 %v495
        %506 = vmatprep.subr.bf16.mxu0 0
        %507 = vmatpush1.bf16.msra.mxu0 %v494
        %508 = vmatprep.subr.bf16.mxu0 0
        %509 = vmatpush1.bf16.msra.mxu0 %v493
        %510 = vmatprep.subr.bf16.mxu0 0
        %511 = vmatpush1.bf16.msra.mxu0 %v492
        %512 = vmatprep.subr.bf16.mxu0 0
        %513 = vmatpush1.bf16.msra.mxu0 %v491
        %514 = vmatprep.subr.bf16.mxu0 0
        %515 = vmatpush1.bf16.msra.mxu0 %v490
        %516 = vmatprep.subr.bf16.mxu0 0
        %517 = vmatpush1.bf16.msra.mxu0 %v489
        %518 = vmatprep.subr.bf16.mxu0 0
        %519 = vmatpush1.bf16.msra.mxu0 %v488
        %520 = vmatprep.subr.bf16.mxu0 0
        %521 = vmatpush2.bf16.msra.mxu0 0
        %522 = vmatprep.subr.bf16.mxu0 0
        %523 = vmatpush2.bf16.msra.mxu0 0
        %524 = vmatprep.subr.bf16.mxu0 0
        %525 = vmatpush2.bf16.msra.mxu0 0
        %526 = vmatprep.subr.bf16.mxu0 0
        %527 = vmatpush2.bf16.msra.mxu0 0
        %528 = vmatprep.subr.bf16.mxu0 0
        %529 = vmatpush2.bf16.msra.mxu0 0
        %530 = vmatprep.subr.bf16.mxu0 0
        %531 = vmatpush2.bf16.msra.mxu0 0
        %532 = vmatprep.subr.bf16.mxu0 0
        %533 = vmatpush2.bf16.msra.mxu0 0
        %534 = vmatprep.subr.bf16.mxu0 0
        %535 = vmatpush2.bf16.msra.mxu0 0
        %536 = vmatprep.mubr.bf16.mxu0 0
        %537 = vmatmul.mubr.bf16.gmra.mxu0 %v333
        %v538 = vpop.f32.mrf.mxu0
        %v539 = vadd.f32 %v455, %v538
        %v540 = vpop.f32.mrf.mxu0
        %v541 = vpop.f32.mrf.mxu0
        %v542 = vadd.f32 %v455, %v541
        %v543 = vpop.f32.mrf.mxu0
        %544 = vdwg.mxu0
        %v545 = vpack.c.bf16 %v436, %v433
        %v546 = vld [vmem:[#allocation3 + $0x120] sm:$0xf]
        %v547 = vld [vmem:[#allocation3 + $0x128] sm:$0xf]
        %v548 = vld [vmem:[#allocation3 + $0x130] sm:$0xf]
        %v549 = vld [vmem:[#allocation3 + $0x138] sm:$0xf]
        %v550 = vld [vmem:[#allocation5 + $0x18] ss:$0 sm:$0xff]
        %v555 = vunpack.c.l.b16 %v546
        %v556 = vunpack.c.l.b16 %v547
        %v557 = vunpack.c.l.b16 %v548
        %v558 = vunpack.c.l.b16 %v549
        %v559 = vpack.c.b16 %v556, %v555
        %v560 = vpack.c.b16 %v558, %v557
        %v564 = vsel %vm270, %v545, 0
        %566 = vmatprep.subr.bf16.mxu0 0
        %567 = vmatpush1.bf16.msra.mxu0 0
        %568 = vmatprep.subr.bf16.mxu0 0
        %569 = vmatpush1.bf16.msra.mxu0 0
        %570 = vmatprep.subr.bf16.mxu0 0
        %571 = vmatpush1.bf16.msra.mxu0 0
        %572 = vmatprep.subr.bf16.mxu0 0
        %573 = vmatpush1.bf16.msra.mxu0 0
        %574 = vmatprep.subr.bf16.mxu0 0
        %575 = vmatpush1.bf16.msra.mxu0 0
        %576 = vmatprep.subr.bf16.mxu0 0
        %577 = vmatpush1.bf16.msra.mxu0 0
        %578 = vmatprep.subr.bf16.mxu0 0
        %579 = vmatpush1.bf16.msra.mxu0 %v560
        %580 = vmatprep.subr.bf16.mxu0 0
        %581 = vmatpush1.bf16.msra.mxu0 %v559
        %582 = vmatprep.subr.bf16.mxu0 0
        %583 = vmatpush2.bf16.msra.mxu0 0
        %584 = vmatprep.subr.bf16.mxu0 0
        %585 = vmatpush2.bf16.msra.mxu0 0
        %586 = vmatprep.subr.bf16.mxu0 0
        %587 = vmatpush2.bf16.msra.mxu0 0
        %588 = vmatprep.subr.bf16.mxu0 0
        %589 = vmatpush2.bf16.msra.mxu0 0
        %590 = vmatprep.subr.bf16.mxu0 0
        %591 = vmatpush2.bf16.msra.mxu0 0
        %592 = vmatprep.subr.bf16.mxu0 0
        %593 = vmatpush2.bf16.msra.mxu0 0
        %594 = vmatprep.subr.bf16.mxu0 0
        %595 = vmatpush2.bf16.msra.mxu0 0
        %596 = vmatprep.subr.bf16.mxu0 0
        %597 = vmatpush2.bf16.msra.mxu0 0
        %598 = vmatprep.mubr.bf16.mxu0 0
        %599 = vmatmul.mubr.bf16.gmra.mxu0 %v564
        %v600 = vpop.f32.mrf.mxu0
        %v601 = vadd.f32 %v550, %v600
        %v602 = vpop.f32.mrf.mxu0
        %v603 = vpop.f32.mrf.mxu0
        %v604 = vadd.f32 %v550, %v603
        %v605 = vpop.f32.mrf.mxu0
        %606 = vdwg.mxu0
        %v607 = vld [vmem:[#allocation5 + $0x68] sm:$0xf]
        %vm608 = vcmask 31744
        %v610 = vsel %vm608, %v607, 0
        %v613 = vsel %vm608, %v601, 0
        %v616 = vsel %vm608, %v604, 0
        %618 = vmatprep.subr.mxu0 0.0
        %619 = vmatpush1.xpose.msra.mxu0 0.0
        %620 = vmatprep.subr.mxu0 0.0
        %621 = vmatpush1.xpose.msra.mxu0 0.0
        %622 = vmatprep.subr.mxu0 0.0
        %623 = vmatpush1.xpose.msra.mxu0 0.0
        %624 = vmatprep.subr.mxu0 0.0
        %625 = vmatpush1.xpose.msra.mxu0 0.0
        %626 = vmatprep.subr.mxu0 0.0
        %627 = vmatpush1.xpose.msra.mxu0 0.0
        %628 = vmatprep.subr.mxu0 0.0
        %629 = vmatpush1.xpose.msra.mxu0 0.0
        %630 = vmatprep.subr.mxu0 0.0
        %631 = vmatpush1.xpose.msra.mxu0 0.0
        %632 = vmatprep.subr.mxu0 0.0
        %633 = vmatpush1.xpose.msra.mxu0 0.0
        %634 = vmatprep.subr.mxu0 0.0
        %635 = vmatpush1.xpose.msra.mxu0 0.0
        %636 = vmatprep.subr.mxu0 0.0
        %637 = vmatpush1.xpose.msra.mxu0 0.0
        %638 = vmatprep.subr.mxu0 0.0
        %639 = vmatpush1.xpose.msra.mxu0 0.0
        %640 = vmatprep.subr.mxu0 0.0
        %641 = vmatpush1.xpose.msra.mxu0 0.0
        %642 = vmatprep.subr.mxu0 0.0
        %643 = vmatpush1.xpose.msra.mxu0 0.0
        %644 = vmatprep.subr.mxu0 0.0
        %645 = vmatpush1.xpose.msra.mxu0 0.0
        %646 = vmatprep.subr.mxu0 0.0
        %647 = vmatpush1.xpose.msra.mxu0 %v616
        %648 = vmatprep.subr.mxu0 0.0
        %649 = vmatpush1.xpose.msra.mxu0 %v613
        %650 = vmatprep.subr.mxu0 0.0
        %651 = vmatpush2.xpose.msra.mxu0 0.0
        %652 = vmatprep.subr.mxu0 0.0
        %653 = vmatpush2.xpose.msra.mxu0 0.0
        %654 = vmatprep.subr.mxu0 0.0
        %655 = vmatpush2.xpose.msra.mxu0 0.0
        %656 = vmatprep.subr.mxu0 0.0
        %657 = vmatpush2.xpose.msra.mxu0 0.0
        %658 = vmatprep.subr.mxu0 0.0
        %659 = vmatpush2.xpose.msra.mxu0 0.0
        %660 = vmatprep.subr.mxu0 0.0
        %661 = vmatpush2.xpose.msra.mxu0 0.0
        %662 = vmatprep.subr.mxu0 0.0
        %663 = vmatpush2.xpose.msra.mxu0 0.0
        %664 = vmatprep.subr.mxu0 0.0
        %665 = vmatpush2.xpose.msra.mxu0 0.0
        %666 = vmatprep.subr.mxu0 0.0
        %667 = vmatpush2.xpose.msra.mxu0 0.0
        %668 = vmatprep.subr.mxu0 0.0
        %669 = vmatpush2.xpose.msra.mxu0 0.0
        %670 = vmatprep.subr.mxu0 0.0
        %671 = vmatpush2.xpose.msra.mxu0 0.0
        %672 = vmatprep.subr.mxu0 0.0
        %673 = vmatpush2.xpose.msra.mxu0 0.0
        %674 = vmatprep.subr.mxu0 0.0
        %675 = vmatpush2.xpose.msra.mxu0 0.0
        %676 = vmatprep.subr.mxu0 0.0
        %677 = vmatpush2.xpose.msra.mxu0 0.0
        %678 = vmatprep.subr.mxu0 0.0
        %679 = vmatpush2.xpose.msra.mxu0 0.0
        %680 = vmatprep.subr.mxu0 0.0
        %681 = vmatpush2.xpose.msra.mxu0 0.0
        %682 = vmatprep.mubr.f32.mxu0 0.0
        %683 = vmatmul.mubr.f32.gmra.mxu0 %v610
        %v684 = vpop.f32.mrf.mxu0
        %v685 = vadd.f32 0.0, %v684
        %v686 = vpop.f32.mrf.mxu0
        %687 = vdwg.mxu0
        %688 = vset.pattern.permute.xlu0 0
        %689 = vperm.xlu0 %688, %v601
        %v690 = vpop.permute.xlu0 %689
        %692 = vset.pattern.permute.xlu0 0
        %693 = vperm.xlu0 %692, %v604
        %v694 = vpop.permute.xlu0 %693
        %v696 = vlaneseq
        %v697 = vshrl.u32 %v696, 7
        %v698 = vsub.s32 2, %v697
        %v699 = vrot.slane %v685, %v698
        %v700 = vadd.f32 %v690, %v699
        %v701 = vadd.f32 %v694, %v699
        %vm702 = vcmp.gt.f32.partialorder %v700, 0.0
        %vm703 = vcmp.gt.f32.partialorder %v701, 0.0
        %v704 = vmul.f32 %v700, 0.2
        %v705 = vmul.f32 %v701, 0.2
        %v706 = vsel %vm702, %v700, %v704
        %v707 = vsel %vm703, %v701, %v705
        %v708 = vadd.f32 %v706, %v229
        %v709 = vadd.f32 %v707, %v230
        %vm710 = vcmask 97280
        %v711 = vsel %vm710, %v708, -inf
        %712 = vmax.xlane.f32.xlu0 %v711
        %v713 = vpop.xlane.xlu0 %712
        %vm714 = vcmask 93184
        %v715 = vsel %vm714, %v709, -inf
        %716 = vmax.xlane.f32.xlu0 %v715
        %v717 = vpop.xlane.xlu0 %716
        %v718 = vsub.f32 %v708, %v713
        %v719 = vsub.f32 %v709, %v717
        %v720 = vmul.f32 %v718, 1.442695
        %v721 = vpow.pop %v720
        %v722 = vmul.f32 %v719, 1.442695
        %v723 = vpow.pop %v722
        %v724 = vsel %vm710, %v721, 0.0
        %725 = vadd.xlane.f32.xlu0 %v724
        %v726 = vpop.xlane.xlu0 %725
        %v727 = vsel %vm714, %v723, 0.0
        %728 = vadd.xlane.f32.xlu0 %v727
        %v729 = vpop.xlane.xlu0 %728
        %v730 = vrcp.pop %v726
        %v731 = vrcp.pop %v729
        %v732 = vmul.f32 %v721, %v730
        %v733 = vmul.f32 %v723, %v731
        %v734 = vpack.c.bf16 %v733, %v732
        %v736 = vsel %vm710, %v734, 0
        %vm738 = vcmask 1045504
        %v739 = vsel %vm738, %v545, 0
        %741 = vmatprep.subr.bf16.mxu0 0
        %742 = vmatpush1.bf16.msra.mxu0 0
        %743 = vmatprep.subr.bf16.mxu0 0
        %744 = vmatpush1.bf16.msra.mxu0 0
        %745 = vmatprep.subr.bf16.mxu0 0
        %746 = vmatpush1.bf16.msra.mxu0 0
        %747 = vmatprep.subr.bf16.mxu0 0
        %748 = vmatpush1.bf16.msra.mxu0 0
        %749 = vmatprep.subr.bf16.mxu0 0
        %750 = vmatpush1.bf16.msra.mxu0 0
        %751 = vmatprep.subr.bf16.mxu0 0
        %752 = vmatpush1.bf16.msra.mxu0 0
        %753 = vmatprep.subr.bf16.mxu0 0
        %754 = vmatpush1.bf16.msra.mxu0 0
        %755 = vmatprep.subr.bf16.mxu0 0
        %756 = vmatpush1.bf16.msra.mxu0 %v739
        %757 = vmatprep.subr.bf16.mxu0 0
        %758 = vmatpush2.bf16.msra.mxu0 0
        %759 = vmatprep.subr.bf16.mxu0 0
        %760 = vmatpush2.bf16.msra.mxu0 0
        %761 = vmatprep.subr.bf16.mxu0 0
        %762 = vmatpush2.bf16.msra.mxu0 0
        %763 = vmatprep.subr.bf16.mxu0 0
        %764 = vmatpush2.bf16.msra.mxu0 0
        %765 = vmatprep.subr.bf16.mxu0 0
        %766 = vmatpush2.bf16.msra.mxu0 0
        %767 = vmatprep.subr.bf16.mxu0 0
        %768 = vmatpush2.bf16.msra.mxu0 0
        %769 = vmatprep.subr.bf16.mxu0 0
        %770 = vmatpush2.bf16.msra.mxu0 0
        %771 = vmatprep.subr.bf16.mxu0 0
        %772 = vmatpush2.bf16.msra.mxu0 0
        %773 = vmatprep.mubr.bf16.mxu0 0
        %774 = vmatmul.mubr.bf16.gmra.mxu0 %v736
        %v775 = vpop.f32.mrf.mxu0
        %v776 = vadd.f32 %v539, %v775
        %v777 = vpop.f32.mrf.mxu0
        %v778 = vpop.f32.mrf.mxu0
        %v779 = vadd.f32 %v542, %v778
        %v780 = vpop.f32.mrf.mxu0
        %781 = vdwg.mxu0
        %vm782 = vcmp.gt.f32.partialorder %v776, 0.0
        %vm783 = vcmp.gt.f32.partialorder %v779, 0.0
        %v784 = vmin.f32 %v776, 0.0
        %v785 = vmin.f32 %v779, 0.0
        %v786 = vmul.f32 %v784, 1.442695
        %v787 = vpow.pop %v786
        %v788 = vmul.f32 %v785, 1.442695
        %v789 = vpow.pop %v788
        %v790 = vsub.f32 %v787, 1.0
        %v791 = vsub.f32 %v789, 1.0
        %v792 = vsel %vm782, %v776, %v790
        %v793 = vsel %vm783, %v779, %v791
        %vm794 = vcmask 130048
        %795 = vst.msk [vmem:[#allocation2] sm:$0xff] %vm794, %v792
        %vm796 = vcmask 125952
        %797 = vst.msk [vmem:[#allocation2 + $0x8] sm:$0xf] %vm796, %v793
        %798 = vset.pattern.permute.xlu0 1
        %799 = vperm.xlu0 %798, %v601
        %v800 = vpop.permute.xlu0 %799
        %802 = vset.pattern.permute.xlu0 1
        %803 = vperm.xlu0 %802, %v604
        %v804 = vpop.permute.xlu0 %803
        %v806 = vlaneseq
        %v807 = vshrl.u32 %v806, 7
        %v808 = vsub.s32 3, %v807
        %v809 = vrot.slane %v685, %v808
        %v810 = vadd.f32 %v800, %v809
        %v811 = vadd.f32 %v804, %v809
        %vm812 = vcmp.gt.f32.partialorder %v810, 0.0
        %vm813 = vcmp.gt.f32.partialorder %v811, 0.0
        %v814 = vmul.f32 %v810, 0.2
        %v815 = vmul.f32 %v811, 0.2
        %v816 = vsel %vm812, %v810, %v814
        %v817 = vsel %vm813, %v811, %v815
        %v818 = vadd.f32 %v816, %v229
        %v819 = vadd.f32 %v817, %v230
        %v820 = vsel %vm710, %v818, -inf
        %821 = vmax.xlane.f32.xlu0 %v820
        %v822 = vpop.xlane.xlu0 %821
        %v823 = vsel %vm714, %v819, -inf
        %824 = vmax.xlane.f32.xlu0 %v823
        %v825 = vpop.xlane.xlu0 %824
        %v826 = vsub.f32 %v818, %v822
        %v827 = vsub.f32 %v819, %v825
        %v828 = vmul.f32 %v826, 1.442695
        %v829 = vpow.pop %v828
        %v830 = vmul.f32 %v827, 1.442695
        %v831 = vpow.pop %v830
        %v832 = vsel %vm710, %v829, 0.0
        %833 = vadd.xlane.f32.xlu0 %v832
        %v834 = vpop.xlane.xlu0 %833
        %v835 = vsel %vm714, %v831, 0.0
        %836 = vadd.xlane.f32.xlu0 %v835
        %v837 = vpop.xlane.xlu0 %836
        %v838 = vrcp.pop %v834
        %v839 = vrcp.pop %v837
        %v840 = vmul.f32 %v829, %v838
        %v841 = vmul.f32 %v831, %v839
        %v842 = vpack.c.bf16 %v841, %v840
        %844 = vrot.lane.b32.xlu0 %v545, 112
        %v845 = vpop.permute.xlu0 %844
        %848 = vrot.lane.b32.xlu0 %v539, 112
        %v849 = vpop.permute.xlu0 %848
        %850 = vrot.lane.b32.xlu0 %v542, 112
        %v851 = vpop.permute.xlu0 %850
        %v855 = vsel %vm710, %v842, 0
        %v858 = vsel %vm738, %v845, 0
        %860 = vmatprep.subr.bf16.mxu0 0
        %861 = vmatpush1.bf16.msra.mxu0 0
        %862 = vmatprep.subr.bf16.mxu0 0
        %863 = vmatpush1.bf16.msra.mxu0 0
        %864 = vmatprep.subr.bf16.mxu0 0
        %865 = vmatpush1.bf16.msra.mxu0 0
        %866 = vmatprep.subr.bf16.mxu0 0
        %867 = vmatpush1.bf16.msra.mxu0 0
        %868 = vmatprep.subr.bf16.mxu0 0
        %869 = vmatpush1.bf16.msra.mxu0 0
        %870 = vmatprep.subr.bf16.mxu0 0
        %871 = vmatpush1.bf16.msra.mxu0 0
        %872 = vmatprep.subr.bf16.mxu0 0
        %873 = vmatpush1.bf16.msra.mxu0 0
        %874 = vmatprep.subr.bf16.mxu0 0
        %875 = vmatpush1.bf16.msra.mxu0 %v858
        %876 = vmatprep.subr.bf16.mxu0 0
        %877 = vmatpush2.bf16.msra.mxu0 0
        %878 = vmatprep.subr.bf16.mxu0 0
        %879 = vmatpush2.bf16.msra.mxu0 0
        %880 = vmatprep.subr.bf16.mxu0 0
        %881 = vmatpush2.bf16.msra.mxu0 0
        %882 = vmatprep.subr.bf16.mxu0 0
        %883 = vmatpush2.bf16.msra.mxu0 0
        %884 = vmatprep.subr.bf16.mxu0 0
        %885 = vmatpush2.bf16.msra.mxu0 0
        %886 = vmatprep.subr.bf16.mxu0 0
        %887 = vmatpush2.bf16.msra.mxu0 0
        %888 = vmatprep.subr.bf16.mxu0 0
        %889 = vmatpush2.bf16.msra.mxu0 0
        %890 = vmatprep.subr.bf16.mxu0 0
        %891 = vmatpush2.bf16.msra.mxu0 0
        %892 = vmatprep.mubr.bf16.mxu0 0
        %893 = vmatmul.mubr.bf16.gmra.mxu0 %v855
        %v894 = vpop.f32.mrf.mxu0
        %v895 = vadd.f32 %v849, %v894
        %v896 = vpop.f32.mrf.mxu0
        %v897 = vpop.f32.mrf.mxu0
        %v898 = vadd.f32 %v851, %v897
        %v899 = vpop.f32.mrf.mxu0
        %900 = vdwg.mxu0
        %vm901 = vcmp.gt.f32.partialorder %v895, 0.0
        %vm902 = vcmp.gt.f32.partialorder %v898, 0.0
        %v903 = vmin.f32 %v895, 0.0
        %v904 = vmin.f32 %v898, 0.0
        %v905 = vmul.f32 %v903, 1.442695
        %v906 = vpow.pop %v905
        %v907 = vmul.f32 %v904, 1.442695
        %v908 = vpow.pop %v907
        %v909 = vsub.f32 %v906, 1.0
        %v910 = vsub.f32 %v908, 1.0
        %v911 = vsel %vm901, %v895, %v909
        %v912 = vsel %vm902, %v898, %v910
        %915 = vrot.lane.b32.xlu0 %v911, 16
        %v916 = vpop.permute.xlu0 %915
        %917 = vrot.lane.b32.xlu0 %v912, 16
        %v918 = vpop.permute.xlu0 %917
        %vm921 = vcmask 261248
        %922 = vst.msk [vmem:[#allocation2] sm:$0xff] %vm921, %v916
        %vm923 = vcmask 257152
        %924 = vst.msk [vmem:[#allocation2 + $0x8] sm:$0xf] %vm923, %v918
        %v925 = vld [vmem:[#allocation2] sm:$0xff]
        %v926 = vld [vmem:[#allocation2 + $0x8] sm:$0xf]
        %v927 = vmax.f32 %v925, 0.0
        %v928 = vmax.f32 %v926, 0.0
        %v929 = vld [vmem:[#allocation5 + $0x20] sm:$0xff]
        %v930 = vld [vmem:[#allocation5 + $0x90] sm:$0xf]
        %932 = vset.pattern.permute.xlu0 0
        %933 = vperm.xlu0 %932, %v929
        %v934 = vpop.permute.xlu0 %933
        %937 = vset.pattern.permute.xlu0 0
        %938 = vperm.xlu0 %937, %v930
        %v939 = vpop.permute.xlu0 %938
        %v941 = vmul.f32 %v927, %v934
        %v942 = vmul.f32 %v928, %v939
        %943 = vset.pattern.permute.xlu0 1
        %944 = vperm.xlu0 %943, %v929
        %v945 = vpop.permute.xlu0 %944
        %947 = vset.pattern.permute.xlu0 1
        %948 = vperm.xlu0 %947, %v930
        %v949 = vpop.permute.xlu0 %948
        %v951 = vadd.f32 %v941, %v945
        %v952 = vadd.f32 %v942, %v949
        %v953 = vpack.c.bf16 %v952, %v951
        %v954 = vld [vmem:[#allocation3 + $0x140] sm:$0xf]
        %v955 = vld [vmem:[#allocation3 + $0x148] sm:$0xf]
        %v956 = vld [vmem:[#allocation3 + $0x150] sm:$0xf]
        %v957 = vld [vmem:[#allocation3 + $0x158] sm:$0xf]
        %v958 = vld [vmem:[#allocation5 + $0x28] ss:$0 sm:$0xff]
        %v963 = vunpack.c.l.b16 %v954
        %v964 = vunpack.c.l.b16 %v955
        %v965 = vunpack.c.l.b16 %v956
        %v966 = vunpack.c.l.b16 %v957
        %v967 = vpack.c.b16 %v964, %v963
        %v968 = vpack.c.b16 %v966, %v965
        %v972 = vsel %vm270, %v953, 0
        %974 = vmatprep.subr.bf16.mxu0 0
        %975 = vmatpush1.bf16.msra.mxu0 0
        %976 = vmatprep.subr.bf16.mxu0 0
        %977 = vmatpush1.bf16.msra.mxu0 0
        %978 = vmatprep.subr.bf16.mxu0 0
        %979 = vmatpush1.bf16.msra.mxu0 0
        %980 = vmatprep.subr.bf16.mxu0 0
        %981 = vmatpush1.bf16.msra.mxu0 0
        %982 = vmatprep.subr.bf16.mxu0 0
        %983 = vmatpush1.bf16.msra.mxu0 0
        %984 = vmatprep.subr.bf16.mxu0 0
        %985 = vmatpush1.bf16.msra.mxu0 0
        %986 = vmatprep.subr.bf16.mxu0 0
        %987 = vmatpush1.bf16.msra.mxu0 %v968
        %988 = vmatprep.subr.bf16.mxu0 0
        %989 = vmatpush1.bf16.msra.mxu0 %v967
        %990 = vmatprep.subr.bf16.mxu0 0
        %991 = vmatpush2.bf16.msra.mxu0 0
        %992 = vmatprep.subr.bf16.mxu0 0
        %993 = vmatpush2.bf16.msra.mxu0 0
        %994 = vmatprep.subr.bf16.mxu0 0
        %995 = vmatpush2.bf16.msra.mxu0 0
        %996 = vmatprep.subr.bf16.mxu0 0
        %997 = vmatpush2.bf16.msra.mxu0 0
        %998 = vmatprep.subr.bf16.mxu0 0
        %999 = vmatpush2.bf16.msra.mxu0 0
        %1000 = vmatprep.subr.bf16.mxu0 0
        %1001 = vmatpush2.bf16.msra.mxu0 0
        %1002 = vmatprep.subr.bf16.mxu0 0
        %1003 = vmatpush2.bf16.msra.mxu0 0
        %1004 = vmatprep.subr.bf16.mxu0 0
        %1005 = vmatpush2.bf16.msra.mxu0 0
        %1006 = vmatprep.mubr.bf16.mxu0 0
        %1007 = vmatmul.mubr.bf16.gmra.mxu0 %v972
        %v1008 = vpop.f32.mrf.mxu0
        %v1009 = vadd.f32 %v958, %v1008
        %v1010 = vpop.f32.mrf.mxu0
        %v1011 = vpop.f32.mrf.mxu0
        %v1012 = vadd.f32 %v958, %v1011
        %v1013 = vpop.f32.mrf.mxu0
        %1014 = vdwg.mxu0
        %v1015 = vxor.u32 %v1009, 2147483648
        %v1016 = vxor.u32 %v1012, 2147483648
        %v1017 = vmul.f32 %v1015, 1.442695
        %v1018 = vpow.pop %v1017
        %v1019 = vmul.f32 %v1016, 1.442695
        %v1020 = vpow.pop %v1019
        %v1021 = vadd.f32 %v1018, 1.0
        %v1022 = vadd.f32 %v1020, 1.0
        %v1023 = vrcp.pop %v1021
        %v1024 = vmul.f32 1.0, %v1023
        %v1025 = vrcp.pop %v1022
        %v1026 = vmul.f32 1.0, %v1025
        %1029 = vrot.lane.b32.xlu0 %v1024, 96
        %v1030 = vpop.permute.xlu0 %1029
        %1031 = vrot.lane.b32.xlu0 %v1026, 96
        %v1032 = vpop.permute.xlu0 %1031
        %v1035 = vadd.f32 %v1009, %v1030
        %v1036 = vadd.f32 %v1012, %v1032
        %v1037 = vmax.f32 %v1035, 0.0
        %v1038 = vmax.f32 %v1036, 0.0
        %v1039 = vpack.c.bf16 %v1038, %v1037
        %v1040 = vld [vmem:[#allocation3 + $0x160] sm:$0xf]
        %v1041 = vld [vmem:[#allocation3 + $0x168] sm:$0xf]
        %v1042 = vld [vmem:[#allocation3 + $0x170] sm:$0xf]
        %v1043 = vld [vmem:[#allocation3 + $0x178] sm:$0xf]
        %v1048 = vunpack.c.l.b16 %v1040
        %v1049 = vunpack.c.l.b16 %v1041
        %v1050 = vunpack.c.l.b16 %v1042
        %v1051 = vunpack.c.l.b16 %v1043
        %v1052 = vpack.c.b16 %v1049, %v1048
        %v1053 = vpack.c.b16 %v1051, %v1050
        %v1057 = vsel %vm270, %v1039, 0
        %1059 = vmatprep.subr.bf16.mxu0 0
        %1060 = vmatpush1.bf16.msra.mxu0 0
        %1061 = vmatprep.subr.bf16.mxu0 0
        %1062 = vmatpush1.bf16.msra.mxu0 0
        %1063 = vmatprep.subr.bf16.mxu0 0
        %1064 = vmatpush1.bf16.msra.mxu0 0
        %1065 = vmatprep.subr.bf16.mxu0 0
        %1066 = vmatpush1.bf16.msra.mxu0 0
        %1067 = vmatprep.subr.bf16.mxu0 0
        %1068 = vmatpush1.bf16.msra.mxu0 0
        %1069 = vmatprep.subr.bf16.mxu0 0
        %1070 = vmatpush1.bf16.msra.mxu0 0
        %1071 = vmatprep.subr.bf16.mxu0 0
        %1072 = vmatpush1.bf16.msra.mxu0 %v1053
        %1073 = vmatprep.subr.bf16.mxu0 0
        %1074 = vmatpush1.bf16.msra.mxu0 %v1052
        %1075 = vmatprep.subr.bf16.mxu0 0
        %1076 = vmatpush2.bf16.msra.mxu0 0
        %1077 = vmatprep.subr.bf16.mxu0 0
        %1078 = vmatpush2.bf16.msra.mxu0 0
        %1079 = vmatprep.subr.bf16.mxu0 0
        %1080 = vmatpush2.bf16.msra.mxu0 0
        %1081 = vmatprep.subr.bf16.mxu0 0
        %1082 = vmatpush2.bf16.msra.mxu0 0
        %1083 = vmatprep.subr.bf16.mxu0 0
        %1084 = vmatpush2.bf16.msra.mxu0 0
        %1085 = vmatprep.subr.bf16.mxu0 0
        %1086 = vmatpush2.bf16.msra.mxu0 0
        %1087 = vmatprep.subr.bf16.mxu0 0
        %1088 = vmatpush2.bf16.msra.mxu0 0
        %1089 = vmatprep.subr.bf16.mxu0 0
        %1090 = vmatpush2.bf16.msra.mxu0 0
        %1091 = vmatprep.mubr.bf16.mxu0 0
        %1092 = vmatmul.mubr.bf16.gmra.mxu0 %v1057
        %v1093 = vpop.f32.mrf.mxu0
        %v1094 = vadd.f32 0.0, %v1093
        %v1095 = vpop.f32.mrf.mxu0
        %v1096 = vpop.f32.mrf.mxu0
        %v1097 = vadd.f32 0.0, %v1096
        %v1098 = vpop.f32.mrf.mxu0
        %1099 = vdwg.mxu0
        %v1100 = vld [vmem:[#allocation3 + $0x180] sm:$0xf]
        %v1101 = vld [vmem:[#allocation3 + $0x188] sm:$0xf]
        %v1102 = vld [vmem:[#allocation3 + $0x190] sm:$0xf]
        %v1103 = vld [vmem:[#allocation3 + $0x198] sm:$0xf]
        %v1104 = vld [vmem:[#allocation5 + $0x30] ss:$0 sm:$0xff]
        %v1109 = vunpack.c.l.b16 %v1100
        %v1110 = vunpack.c.l.b16 %v1101
        %v1111 = vunpack.c.l.b16 %v1102
        %v1112 = vunpack.c.l.b16 %v1103
        %v1113 = vpack.c.b16 %v1110, %v1109
        %v1114 = vpack.c.b16 %v1112, %v1111
        %1117 = vmatprep.subr.bf16.mxu0 0
        %1118 = vmatpush1.bf16.msra.mxu0 0
        %1119 = vmatprep.subr.bf16.mxu0 0
        %1120 = vmatpush1.bf16.msra.mxu0 0
        %1121 = vmatprep.subr.bf16.mxu0 0
        %1122 = vmatpush1.bf16.msra.mxu0 0
        %1123 = vmatprep.subr.bf16.mxu0 0
        %1124 = vmatpush1.bf16.msra.mxu0 0
        %1125 = vmatprep.subr.bf16.mxu0 0
        %1126 = vmatpush1.bf16.msra.mxu0 0
        %1127 = vmatprep.subr.bf16.mxu0 0
        %1128 = vmatpush1.bf16.msra.mxu0 0
        %1129 = vmatprep.subr.bf16.mxu0 0
        %1130 = vmatpush1.bf16.msra.mxu0 %v1114
        %1131 = vmatprep.subr.bf16.mxu0 0
        %1132 = vmatpush1.bf16.msra.mxu0 %v1113
        %1133 = vmatprep.subr.bf16.mxu0 0
        %1134 = vmatpush2.bf16.msra.mxu0 0
        %1135 = vmatprep.subr.bf16.mxu0 0
        %1136 = vmatpush2.bf16.msra.mxu0 0
        %1137 = vmatprep.subr.bf16.mxu0 0
        %1138 = vmatpush2.bf16.msra.mxu0 0
        %1139 = vmatprep.subr.bf16.mxu0 0
        %1140 = vmatpush2.bf16.msra.mxu0 0
        %1141 = vmatprep.subr.bf16.mxu0 0
        %1142 = vmatpush2.bf16.msra.mxu0 0
        %1143 = vmatprep.subr.bf16.mxu0 0
        %1144 = vmatpush2.bf16.msra.mxu0 0
        %1145 = vmatprep.subr.bf16.mxu0 0
        %1146 = vmatpush2.bf16.msra.mxu0 0
        %1147 = vmatprep.subr.bf16.mxu0 0
        %1148 = vmatpush2.bf16.msra.mxu0 0
        %1149 = vmatprep.mubr.bf16.mxu0 0
        %1150 = vmatmul.mubr.bf16.gmra.mxu0 %v1057
        %v1151 = vpop.f32.mrf.mxu0
        %v1152 = vadd.f32 %v1104, %v1151
        %v1153 = vpop.f32.mrf.mxu0
        %v1154 = vpop.f32.mrf.mxu0
        %v1155 = vadd.f32 %v1104, %v1154
        %v1156 = vpop.f32.mrf.mxu0
        %1157 = vdwg.mxu0
        %v1158 = vpack.c.bf16 %v1097, %v1094
        %v1159 = vld [vmem:[#allocation3 + $0x1a0] sm:$0xf]
        %v1160 = vld [vmem:[#allocation3 + $0x1a8] sm:$0xf]
        %v1161 = vld [vmem:[#allocation3 + $0x1b0] sm:$0xf]
        %v1162 = vld [vmem:[#allocation3 + $0x1b8] sm:$0xf]
        %v1163 = vld [vmem:[#allocation3 + $0x1c0] sm:$0xf]
        %v1164 = vld [vmem:[#allocation3 + $0x1c8] sm:$0xf]
        %v1165 = vld [vmem:[#allocation3 + $0x1d0] sm:$0xf]
        %v1166 = vld [vmem:[#allocation3 + $0x1d8] sm:$0xf]
        %v1167 = vld [vmem:[#allocation5 + $0x38] ss:$0 sm:$0xff]
        %v1176 = vunpack.c.l.b16 %v1159
        %v1177 = vunpack.c.l.b16 %v1160
        %v1178 = vunpack.c.l.b16 %v1161
        %v1179 = vunpack.c.l.b16 %v1162
        %v1180 = vunpack.c.l.b16 %v1163
        %v1181 = vunpack.c.l.b16 %v1164
        %v1182 = vunpack.c.l.b16 %v1165
        %v1183 = vunpack.c.l.b16 %v1166
        %v1184 = vpack.c.b16 %v1177, %v1176
        %v1185 = vpack.c.b16 %v1179, %v1178
        %v1186 = vpack.c.b16 %v1181, %v1180
        %v1187 = vpack.c.b16 %v1183, %v1182
        %vm1192 = vcmask 523264
        %v1194 = vsel %vm1192, %v1158, 0
        %1196 = vmatprep.subr.bf16.mxu0 0
        %1197 = vmatpush1.bf16.msra.mxu0 0
        %1198 = vmatprep.subr.bf16.mxu0 0
        %1199 = vmatpush1.bf16.msra.mxu0 0
        %1200 = vmatprep.subr.bf16.mxu0 0
        %1201 = vmatpush1.bf16.msra.mxu0 0
        %1202 = vmatprep.subr.bf16.mxu0 0
        %1203 = vmatpush1.bf16.msra.mxu0 0
        %1204 = vmatprep.subr.bf16.mxu0 0
        %1205 = vmatpush1.bf16.msra.mxu0 %v1187
        %1206 = vmatprep.subr.bf16.mxu0 0
        %1207 = vmatpush1.bf16.msra.mxu0 %v1186
        %1208 = vmatprep.subr.bf16.mxu0 0
        %1209 = vmatpush1.bf16.msra.mxu0 %v1185
        %1210 = vmatprep.subr.bf16.mxu0 0
        %1211 = vmatpush1.bf16.msra.mxu0 %v1184
        %1212 = vmatprep.subr.bf16.mxu0 0
        %1213 = vmatpush2.bf16.msra.mxu0 0
        %1214 = vmatprep.subr.bf16.mxu0 0
        %1215 = vmatpush2.bf16.msra.mxu0 0
        %1216 = vmatprep.subr.bf16.mxu0 0
        %1217 = vmatpush2.bf16.msra.mxu0 0
        %1218 = vmatprep.subr.bf16.mxu0 0
        %1219 = vmatpush2.bf16.msra.mxu0 0
        %1220 = vmatprep.subr.bf16.mxu0 0
        %1221 = vmatpush2.bf16.msra.mxu0 0
        %1222 = vmatprep.subr.bf16.mxu0 0
        %1223 = vmatpush2.bf16.msra.mxu0 0
        %1224 = vmatprep.subr.bf16.mxu0 0
        %1225 = vmatpush2.bf16.msra.mxu0 0
        %1226 = vmatprep.subr.bf16.mxu0 0
        %1227 = vmatpush2.bf16.msra.mxu0 0
        %1228 = vmatprep.mubr.bf16.mxu0 0
        %1229 = vmatmul.mubr.bf16.gmra.mxu0 %v1194
        %v1230 = vpop.f32.mrf.mxu0
        %v1231 = vadd.f32 %v1167, %v1230
        %v1232 = vpop.f32.mrf.mxu0
        %v1233 = vpop.f32.mrf.mxu0
        %v1234 = vadd.f32 %v1167, %v1233
        %v1235 = vpop.f32.mrf.mxu0
        %1236 = vdwg.mxu0
        %v1237 = vld [vmem:[#allocation5 + $0x68] sm:$0xff]
        %vm1238 = vcmask 64512
        %v1240 = vsel %vm1238, %v1237, 0
        %v1243 = vsel %vm1238, %v1231, 0
        %v1246 = vsel %vm1238, %v1234, 0
        %1248 = vmatprep.subr.mxu0 0.0
        %1249 = vmatpush1.xpose.msra.mxu0 0.0
        %1250 = vmatprep.subr.mxu0 0.0
        %1251 = vmatpush1.xpose.msra.mxu0 0.0
        %1252 = vmatprep.subr.mxu0 0.0
        %1253 = vmatpush1.xpose.msra.mxu0 0.0
        %1254 = vmatprep.subr.mxu0 0.0
        %1255 = vmatpush1.xpose.msra.mxu0 0.0
        %1256 = vmatprep.subr.mxu0 0.0
        %1257 = vmatpush1.xpose.msra.mxu0 0.0
        %1258 = vmatprep.subr.mxu0 0.0
        %1259 = vmatpush1.xpose.msra.mxu0 0.0
        %1260 = vmatprep.subr.mxu0 0.0
        %1261 = vmatpush1.xpose.msra.mxu0 0.0
        %1262 = vmatprep.subr.mxu0 0.0
        %1263 = vmatpush1.xpose.msra.mxu0 0.0
        %1264 = vmatprep.subr.mxu0 0.0
        %1265 = vmatpush1.xpose.msra.mxu0 0.0
        %1266 = vmatprep.subr.mxu0 0.0
        %1267 = vmatpush1.xpose.msra.mxu0 0.0
        %1268 = vmatprep.subr.mxu0 0.0
        %1269 = vmatpush1.xpose.msra.mxu0 0.0
        %1270 = vmatprep.subr.mxu0 0.0
        %1271 = vmatpush1.xpose.msra.mxu0 0.0
        %1272 = vmatprep.subr.mxu0 0.0
        %1273 = vmatpush1.xpose.msra.mxu0 0.0
        %1274 = vmatprep.subr.mxu0 0.0
        %1275 = vmatpush1.xpose.msra.mxu0 0.0
        %1276 = vmatprep.subr.mxu0 0.0
        %1277 = vmatpush1.xpose.msra.mxu0 %v1246
        %1278 = vmatprep.subr.mxu0 0.0
        %1279 = vmatpush1.xpose.msra.mxu0 %v1243
        %1280 = vmatprep.subr.mxu0 0.0
        %1281 = vmatpush2.xpose.msra.mxu0 0.0
        %1282 = vmatprep.subr.mxu0 0.0
        %1283 = vmatpush2.xpose.msra.mxu0 0.0
        %1284 = vmatprep.subr.mxu0 0.0
        %1285 = vmatpush2.xpose.msra.mxu0 0.0
        %1286 = vmatprep.subr.mxu0 0.0
        %1287 = vmatpush2.xpose.msra.mxu0 0.0
        %1288 = vmatprep.subr.mxu0 0.0
        %1289 = vmatpush2.xpose.msra.mxu0 0.0
        %1290 = vmatprep.subr.mxu0 0.0
        %1291 = vmatpush2.xpose.msra.mxu0 0.0
        %1292 = vmatprep.subr.mxu0 0.0
        %1293 = vmatpush2.xpose.msra.mxu0 0.0
        %1294 = vmatprep.subr.mxu0 0.0
        %1295 = vmatpush2.xpose.msra.mxu0 0.0
        %1296 = vmatprep.subr.mxu0 0.0
        %1297 = vmatpush2.xpose.msra.mxu0 0.0
        %1298 = vmatprep.subr.mxu0 0.0
        %1299 = vmatpush2.xpose.msra.mxu0 0.0
        %1300 = vmatprep.subr.mxu0 0.0
        %1301 = vmatpush2.xpose.msra.mxu0 0.0
        %1302 = vmatprep.subr.mxu0 0.0
        %1303 = vmatpush2.xpose.msra.mxu0 0.0
        %1304 = vmatprep.subr.mxu0 0.0
        %1305 = vmatpush2.xpose.msra.mxu0 0.0
        %1306 = vmatprep.subr.mxu0 0.0
        %1307 = vmatpush2.xpose.msra.mxu0 0.0
        %1308 = vmatprep.subr.mxu0 0.0
        %1309 = vmatpush2.xpose.msra.mxu0 0.0
        %1310 = vmatprep.subr.mxu0 0.0
        %1311 = vmatpush2.xpose.msra.mxu0 0.0
        %1312 = vmatprep.mubr.f32.mxu0 0.0
        %1313 = vmatmul.mubr.f32.gmra.mxu0 %v1240
        %v1314 = vpop.f32.mrf.mxu0
        %v1315 = vadd.f32 0.0, %v1314
        %v1316 = vpop.f32.mrf.mxu0
        %1317 = vdwg.mxu0
        %1318 = vset.pattern.permute.xlu0 0
        %1319 = vperm.xlu0 %1318, %v1231
        %v1320 = vpop.permute.xlu0 %1319
        %1322 = vset.pattern.permute.xlu0 0
        %1323 = vperm.xlu0 %1322, %v1234
        %v1324 = vpop.permute.xlu0 %1323
        %v1326 = vlaneseq
        %v1327 = vshrl.u32 %v1326, 7
        %v1328 = vsub.s32 4, %v1327
        %v1329 = vrot.slane %v1315, %v1328
        %v1330 = vadd.f32 %v1320, %v1329
        %v1331 = vadd.f32 %v1324, %v1329
        %vm1332 = vcmp.gt.f32.partialorder %v1330, 0.0
        %vm1333 = vcmp.gt.f32.partialorder %v1331, 0.0
        %v1334 = vmul.f32 %v1330, 0.2
        %v1335 = vmul.f32 %v1331, 0.2
        %v1336 = vsel %vm1332, %v1330, %v1334
        %v1337 = vsel %vm1333, %v1331, %v1335
        %v1338 = vadd.f32 %v1336, %v229
        %v1339 = vadd.f32 %v1337, %v230
        %v1340 = vsel %vm710, %v1338, -inf
        %1341 = vmax.xlane.f32.xlu0 %v1340
        %v1342 = vpop.xlane.xlu0 %1341
        %v1343 = vsel %vm714, %v1339, -inf
        %1344 = vmax.xlane.f32.xlu0 %v1343
        %v1345 = vpop.xlane.xlu0 %1344
        %v1346 = vsub.f32 %v1338, %v1342
        %v1347 = vsub.f32 %v1339, %v1345
        %v1348 = vmul.f32 %v1346, 1.442695
        %v1349 = vpow.pop %v1348
        %v1350 = vmul.f32 %v1347, 1.442695
        %v1351 = vpow.pop %v1350
        %v1352 = vsel %vm710, %v1349, 0.0
        %1353 = vadd.xlane.f32.xlu0 %v1352
        %v1354 = vpop.xlane.xlu0 %1353
        %v1355 = vsel %vm714, %v1351, 0.0
        %1356 = vadd.xlane.f32.xlu0 %v1355
        %v1357 = vpop.xlane.xlu0 %1356
        %v1358 = vrcp.pop %v1354
        %v1359 = vrcp.pop %v1357
        %v1360 = vmul.f32 %v1349, %v1358
        %v1361 = vmul.f32 %v1351, %v1359
        %v1362 = vpack.c.bf16 %v1361, %v1360
        %v1364 = vsel %vm710, %v1362, 0
        %v1366 = vsel %vm738, %v1158, 0
        %1368 = vmatprep.subr.bf16.mxu0 0
        %1369 = vmatpush1.bf16.msra.mxu0 0
        %1370 = vmatprep.subr.bf16.mxu0 0
        %1371 = vmatpush1.bf16.msra.mxu0 0
        %1372 = vmatprep.subr.bf16.mxu0 0
        %1373 = vmatpush1.bf16.msra.mxu0 0
        %1374 = vmatprep.subr.bf16.mxu0 0
        %1375 = vmatpush1.bf16.msra.mxu0 0
        %1376 = vmatprep.subr.bf16.mxu0 0
        %1377 = vmatpush1.bf16.msra.mxu0 0
        %1378 = vmatprep.subr.bf16.mxu0 0
        %1379 = vmatpush1.bf16.msra.mxu0 0
        %1380 = vmatprep.subr.bf16.mxu0 0
        %1381 = vmatpush1.bf16.msra.mxu0 0
        %1382 = vmatprep.subr.bf16.mxu0 0
        %1383 = vmatpush1.bf16.msra.mxu0 %v1366
        %1384 = vmatprep.subr.bf16.mxu0 0
        %1385 = vmatpush2.bf16.msra.mxu0 0
        %1386 = vmatprep.subr.bf16.mxu0 0
        %1387 = vmatpush2.bf16.msra.mxu0 0
        %1388 = vmatprep.subr.bf16.mxu0 0
        %1389 = vmatpush2.bf16.msra.mxu0 0
        %1390 = vmatprep.subr.bf16.mxu0 0
        %1391 = vmatpush2.bf16.msra.mxu0 0
        %1392 = vmatprep.subr.bf16.mxu0 0
        %1393 = vmatpush2.bf16.msra.mxu0 0
        %1394 = vmatprep.subr.bf16.mxu0 0
        %1395 = vmatpush2.bf16.msra.mxu0 0
        %1396 = vmatprep.subr.bf16.mxu0 0
        %1397 = vmatpush2.bf16.msra.mxu0 0
        %1398 = vmatprep.subr.bf16.mxu0 0
        %1399 = vmatpush2.bf16.msra.mxu0 0
        %1400 = vmatprep.mubr.bf16.mxu0 0
        %1401 = vmatmul.mubr.bf16.gmra.mxu0 %v1364
        %v1402 = vpop.f32.mrf.mxu0
        %v1403 = vadd.f32 %v1152, %v1402
        %v1404 = vpop.f32.mrf.mxu0
        %v1405 = vpop.f32.mrf.mxu0
        %v1406 = vadd.f32 %v1155, %v1405
        %v1407 = vpop.f32.mrf.mxu0
        %1408 = vdwg.mxu0
        %1409 = vset.pattern.permute.xlu0 1
        %1410 = vperm.xlu0 %1409, %v1231
        %v1411 = vpop.permute.xlu0 %1410
        %1413 = vset.pattern.permute.xlu0 1
        %1414 = vperm.xlu0 %1413, %v1234
        %v1415 = vpop.permute.xlu0 %1414
        %v1417 = vlaneseq
        %v1418 = vshrl.u32 %v1417, 7
        %v1419 = vsub.s32 5, %v1418
        %v1420 = vrot.slane %v1315, %v1419
        %v1421 = vadd.f32 %v1411, %v1420
        %v1422 = vadd.f32 %v1415, %v1420
        %vm1423 = vcmp.gt.f32.partialorder %v1421, 0.0
        %vm1424 = vcmp.gt.f32.partialorder %v1422, 0.0
        %v1425 = vmul.f32 %v1421, 0.2
        %v1426 = vmul.f32 %v1422, 0.2
        %v1427 = vsel %vm1423, %v1421, %v1425
        %v1428 = vsel %vm1424, %v1422, %v1426
        %v1429 = vadd.f32 %v1427, %v229
        %v1430 = vadd.f32 %v1428, %v230
        %v1431 = vsel %vm710, %v1429, -inf
        %1432 = vmax.xlane.f32.xlu0 %v1431
        %v1433 = vpop.xlane.xlu0 %1432
        %v1434 = vsel %vm714, %v1430, -inf
        %1435 = vmax.xlane.f32.xlu0 %v1434
        %v1436 = vpop.xlane.xlu0 %1435
        %v1437 = vsub.f32 %v1429, %v1433
        %v1438 = vsub.f32 %v1430, %v1436
        %v1439 = vmul.f32 %v1437, 1.442695
        %v1440 = vpow.pop %v1439
        %v1441 = vmul.f32 %v1438, 1.442695
        %v1442 = vpow.pop %v1441
        %v1443 = vsel %vm710, %v1440, 0.0
        %1444 = vadd.xlane.f32.xlu0 %v1443
        %v1445 = vpop.xlane.xlu0 %1444
        %v1446 = vsel %vm714, %v1442, 0.0
        %1447 = vadd.xlane.f32.xlu0 %v1446
        %v1448 = vpop.xlane.xlu0 %1447
        %v1449 = vrcp.pop %v1445
        %v1450 = vrcp.pop %v1448
        %v1451 = vmul.f32 %v1440, %v1449
        %v1452 = vmul.f32 %v1442, %v1450
        %v1453 = vpack.c.bf16 %v1452, %v1451
        %1455 = vrot.lane.b32.xlu0 %v1158, 112
        %v1456 = vpop.permute.xlu0 %1455
        %1459 = vrot.lane.b32.xlu0 %v1152, 112
        %v1460 = vpop.permute.xlu0 %1459
        %1461 = vrot.lane.b32.xlu0 %v1155, 112
        %v1462 = vpop.permute.xlu0 %1461
        %v1466 = vsel %vm710, %v1453, 0
        %v1469 = vsel %vm738, %v1456, 0
        %1471 = vmatprep.subr.bf16.mxu0 0
        %1472 = vmatpush1.bf16.msra.mxu0 0
        %1473 = vmatprep.subr.bf16.mxu0 0
        %1474 = vmatpush1.bf16.msra.mxu0 0
        %1475 = vmatprep.subr.bf16.mxu0 0
        %1476 = vmatpush1.bf16.msra.mxu0 0
        %1477 = vmatprep.subr.bf16.mxu0 0
        %1478 = vmatpush1.bf16.msra.mxu0 0
        %1479 = vmatprep.subr.bf16.mxu0 0
        %1480 = vmatpush1.bf16.msra.mxu0 0
        %1481 = vmatprep.subr.bf16.mxu0 0
        %1482 = vmatpush1.bf16.msra.mxu0 0
        %1483 = vmatprep.subr.bf16.mxu0 0
        %1484 = vmatpush1.bf16.msra.mxu0 0
        %1485 = vmatprep.subr.bf16.mxu0 0
        %1486 = vmatpush1.bf16.msra.mxu0 %v1469
        %1487 = vmatprep.subr.bf16.mxu0 0
        %1488 = vmatpush2.bf16.msra.mxu0 0
        %1489 = vmatprep.subr.bf16.mxu0 0
        %1490 = vmatpush2.bf16.msra.mxu0 0
        %1491 = vmatprep.subr.bf16.mxu0 0
        %1492 = vmatpush2.bf16.msra.mxu0 0
        %1493 = vmatprep.subr.bf16.mxu0 0
        %1494 = vmatpush2.bf16.msra.mxu0 0
        %1495 = vmatprep.subr.bf16.mxu0 0
        %1496 = vmatpush2.bf16.msra.mxu0 0
        %1497 = vmatprep.subr.bf16.mxu0 0
        %1498 = vmatpush2.bf16.msra.mxu0 0
        %1499 = vmatprep.subr.bf16.mxu0 0
        %1500 = vmatpush2.bf16.msra.mxu0 0
        %1501 = vmatprep.subr.bf16.mxu0 0
        %1502 = vmatpush2.bf16.msra.mxu0 0
        %1503 = vmatprep.mubr.bf16.mxu0 0
        %1504 = vmatmul.mubr.bf16.gmra.mxu0 %v1466
        %v1505 = vpop.f32.mrf.mxu0
        %v1506 = vadd.f32 %v1460, %v1505
        %v1507 = vpop.f32.mrf.mxu0
        %v1508 = vpop.f32.mrf.mxu0
        %v1509 = vadd.f32 %v1462, %v1508
        %v1510 = vpop.f32.mrf.mxu0
        %1511 = vdwg.mxu0
        %v1512 = vadd.f32 %v1403, %v1506
        %v1513 = vadd.f32 %v1406, %v1509
        %1514 = vset.pattern.permute.xlu0 2
        %1515 = vperm.xlu0 %1514, %v1231
        %v1516 = vpop.permute.xlu0 %1515
        %1518 = vset.pattern.permute.xlu0 2
        %1519 = vperm.xlu0 %1518, %v1234
        %v1520 = vpop.permute.xlu0 %1519
        %v1522 = vlaneseq
        %v1523 = vshrl.u32 %v1522, 7
        %v1524 = vsub.s32 6, %v1523
        %v1525 = vrot.slane %v1315, %v1524
        %v1526 = vadd.f32 %v1516, %v1525
        %v1527 = vadd.f32 %v1520, %v1525
        %vm1528 = vcmp.gt.f32.partialorder %v1526, 0.0
        %vm1529 = vcmp.gt.f32.partialorder %v1527, 0.0
        %v1530 = vmul.f32 %v1526, 0.2
        %v1531 = vmul.f32 %v1527, 0.2
        %v1532 = vsel %vm1528, %v1526, %v1530
        %v1533 = vsel %vm1529, %v1527, %v1531
        %v1534 = vadd.f32 %v1532, %v229
        %v1535 = vadd.f32 %v1533, %v230
        %v1536 = vsel %vm710, %v1534, -inf
        %1537 = vmax.xlane.f32.xlu0 %v1536
        %v1538 = vpop.xlane.xlu0 %1537
        %v1539 = vsel %vm714, %v1535, -inf
        %1540 = vmax.xlane.f32.xlu0 %v1539
        %v1541 = vpop.xlane.xlu0 %1540
        %v1542 = vsub.f32 %v1534, %v1538
        %v1543 = vsub.f32 %v1535, %v1541
        %v1544 = vmul.f32 %v1542, 1.442695
        %v1545 = vpow.pop %v1544
        %v1546 = vmul.f32 %v1543, 1.442695
        %v1547 = vpow.pop %v1546
        %v1548 = vsel %vm710, %v1545, 0.0
        %1549 = vadd.xlane.f32.xlu0 %v1548
        %v1550 = vpop.xlane.xlu0 %1549
        %v1551 = vsel %vm714, %v1547, 0.0
        %1552 = vadd.xlane.f32.xlu0 %v1551
        %v1553 = vpop.xlane.xlu0 %1552
        %v1554 = vrcp.pop %v1550
        %v1555 = vrcp.pop %v1553
        %v1556 = vmul.f32 %v1545, %v1554
        %v1557 = vmul.f32 %v1547, %v1555
        %v1558 = vpack.c.bf16 %v1557, %v1556
        %1559 = vrot.lane.b32.xlu0 %v1158, 96
        %v1560 = vpop.permute.xlu0 %1559
        %1561 = vrot.lane.b32.xlu0 %v1152, 96
        %v1562 = vpop.permute.xlu0 %1561
        %1563 = vrot.lane.b32.xlu0 %v1155, 96
        %v1564 = vpop.permute.xlu0 %1563
        %v1568 = vsel %vm710, %v1558, 0
        %v1571 = vsel %vm738, %v1560, 0
        %1573 = vmatprep.subr.bf16.mxu0 0
        %1574 = vmatpush1.bf16.msra.mxu0 0
        %1575 = vmatprep.subr.bf16.mxu0 0
        %1576 = vmatpush1.bf16.msra.mxu0 0
        %1577 = vmatprep.subr.bf16.mxu0 0
        %1578 = vmatpush1.bf16.msra.mxu0 0
        %1579 = vmatprep.subr.bf16.mxu0 0
        %1580 = vmatpush1.bf16.msra.mxu0 0
        %1581 = vmatprep.subr.bf16.mxu0 0
        %1582 = vmatpush1.bf16.msra.mxu0 0
        %1583 = vmatprep.subr.bf16.mxu0 0
        %1584 = vmatpush1.bf16.msra.mxu0 0
        %1585 = vmatprep.subr.bf16.mxu0 0
        %1586 = vmatpush1.bf16.msra.mxu0 0
        %1587 = vmatprep.subr.bf16.mxu0 0
        %1588 = vmatpush1.bf16.msra.mxu0 %v1571
        %1589 = vmatprep.subr.bf16.mxu0 0
        %1590 = vmatpush2.bf16.msra.mxu0 0
        %1591 = vmatprep.subr.bf16.mxu0 0
        %1592 = vmatpush2.bf16.msra.mxu0 0
        %1593 = vmatprep.subr.bf16.mxu0 0
        %1594 = vmatpush2.bf16.msra.mxu0 0
        %1595 = vmatprep.subr.bf16.mxu0 0
        %1596 = vmatpush2.bf16.msra.mxu0 0
        %1597 = vmatprep.subr.bf16.mxu0 0
        %1598 = vmatpush2.bf16.msra.mxu0 0
        %1599 = vmatprep.subr.bf16.mxu0 0
        %1600 = vmatpush2.bf16.msra.mxu0 0
        %1601 = vmatprep.subr.bf16.mxu0 0
        %1602 = vmatpush2.bf16.msra.mxu0 0
        %1603 = vmatprep.subr.bf16.mxu0 0
        %1604 = vmatpush2.bf16.msra.mxu0 0
        %1605 = vmatprep.mubr.bf16.mxu0 0
        %1606 = vmatmul.mubr.bf16.gmra.mxu0 %v1568
        %v1607 = vpop.f32.mrf.mxu0
        %v1608 = vadd.f32 %v1562, %v1607
        %v1609 = vpop.f32.mrf.mxu0
        %v1610 = vpop.f32.mrf.mxu0
        %v1611 = vadd.f32 %v1564, %v1610
        %v1612 = vpop.f32.mrf.mxu0
        %1613 = vdwg.mxu0
        %v1614 = vadd.f32 %v1512, %v1608
        %v1615 = vadd.f32 %v1513, %v1611
        %1616 = vset.pattern.permute.xlu0 3
        %1617 = vperm.xlu0 %1616, %v1231
        %v1618 = vpop.permute.xlu0 %1617
        %1620 = vset.pattern.permute.xlu0 3
        %1621 = vperm.xlu0 %1620, %v1234
        %v1622 = vpop.permute.xlu0 %1621
        %v1624 = vlaneseq
        %v1625 = vshrl.u32 %v1624, 7
        %v1626 = vsub.s32 7, %v1625
        %v1627 = vrot.slane %v1315, %v1626
        %v1628 = vadd.f32 %v1618, %v1627
        %v1629 = vadd.f32 %v1622, %v1627
        %vm1630 = vcmp.gt.f32.partialorder %v1628, 0.0
        %vm1631 = vcmp.gt.f32.partialorder %v1629, 0.0
        %v1632 = vmul.f32 %v1628, 0.2
        %v1633 = vmul.f32 %v1629, 0.2
        %v1634 = vsel %vm1630, %v1628, %v1632
        %v1635 = vsel %vm1631, %v1629, %v1633
        %v1636 = vadd.f32 %v1634, %v229
        %v1637 = vadd.f32 %v1635, %v230
        %v1638 = vsel %vm710, %v1636, -inf
        %1639 = vmax.xlane.f32.xlu0 %v1638
        %v1640 = vpop.xlane.xlu0 %1639
        %v1641 = vsel %vm714, %v1637, -inf
        %1642 = vmax.xlane.f32.xlu0 %v1641
        %v1643 = vpop.xlane.xlu0 %1642
        %v1644 = vsub.f32 %v1636, %v1640
        %v1645 = vsub.f32 %v1637, %v1643
        %v1646 = vmul.f32 %v1644, 1.442695
        %v1647 = vpow.pop %v1646
        %v1648 = vmul.f32 %v1645, 1.442695
        %v1649 = vpow.pop %v1648
        %v1650 = vsel %vm710, %v1647, 0.0
        %1651 = vadd.xlane.f32.xlu0 %v1650
        %v1652 = vpop.xlane.xlu0 %1651
        %v1653 = vsel %vm714, %v1649, 0.0
        %1654 = vadd.xlane.f32.xlu0 %v1653
        %v1655 = vpop.xlane.xlu0 %1654
        %v1656 = vrcp.pop %v1652
        %v1657 = vrcp.pop %v1655
        %v1658 = vmul.f32 %v1647, %v1656
        %v1659 = vmul.f32 %v1649, %v1657
        %v1660 = vpack.c.bf16 %v1659, %v1658
        %1661 = vrot.lane.b32.xlu0 %v1158, 80
        %v1662 = vpop.permute.xlu0 %1661
        %1663 = vrot.lane.b32.xlu0 %v1152, 80
        %v1664 = vpop.permute.xlu0 %1663
        %1665 = vrot.lane.b32.xlu0 %v1155, 80
        %v1666 = vpop.permute.xlu0 %1665
        %v1670 = vsel %vm710, %v1660, 0
        %v1673 = vsel %vm738, %v1662, 0
        %1675 = vmatprep.subr.bf16.mxu0 0
        %1676 = vmatpush1.bf16.msra.mxu0 0
        %1677 = vmatprep.subr.bf16.mxu0 0
        %1678 = vmatpush1.bf16.msra.mxu0 0
        %1679 = vmatprep.subr.bf16.mxu0 0
        %1680 = vmatpush1.bf16.msra.mxu0 0
        %1681 = vmatprep.subr.bf16.mxu0 0
        %1682 = vmatpush1.bf16.msra.mxu0 0
        %1683 = vmatprep.subr.bf16.mxu0 0
        %1684 = vmatpush1.bf16.msra.mxu0 0
        %1685 = vmatprep.subr.bf16.mxu0 0
        %1686 = vmatpush1.bf16.msra.mxu0 0
        %1687 = vmatprep.subr.bf16.mxu0 0
        %1688 = vmatpush1.bf16.msra.mxu0 0
        %1689 = vmatprep.subr.bf16.mxu0 0
        %1690 = vmatpush1.bf16.msra.mxu0 %v1673
        %1691 = vmatprep.subr.bf16.mxu0 0
        %1692 = vmatpush2.bf16.msra.mxu0 0
        %1693 = vmatprep.subr.bf16.mxu0 0
        %1694 = vmatpush2.bf16.msra.mxu0 0
        %1695 = vmatprep.subr.bf16.mxu0 0
        %1696 = vmatpush2.bf16.msra.mxu0 0
        %1697 = vmatprep.subr.bf16.mxu0 0
        %1698 = vmatpush2.bf16.msra.mxu0 0
        %1699 = vmatprep.subr.bf16.mxu0 0
        %1700 = vmatpush2.bf16.msra.mxu0 0
        %1701 = vmatprep.subr.bf16.mxu0 0
        %1702 = vmatpush2.bf16.msra.mxu0 0
        %1703 = vmatprep.subr.bf16.mxu0 0
        %1704 = vmatpush2.bf16.msra.mxu0 0
        %1705 = vmatprep.subr.bf16.mxu0 0
        %1706 = vmatpush2.bf16.msra.mxu0 0
        %1707 = vmatprep.mubr.bf16.mxu0 0
        %1708 = vmatmul.mubr.bf16.gmra.mxu0 %v1670
        %v1709 = vpop.f32.mrf.mxu0
        %v1710 = vadd.f32 %v1664, %v1709
        %v1711 = vpop.f32.mrf.mxu0
        %v1712 = vpop.f32.mrf.mxu0
        %v1713 = vadd.f32 %v1666, %v1712
        %v1714 = vpop.f32.mrf.mxu0
        %1715 = vdwg.mxu0
        %v1716 = vadd.f32 %v1614, %v1710
        %v1717 = vadd.f32 %v1615, %v1713
        %v1718 = vmul.f32 %v1716, 0.25
        %v1719 = vmul.f32 %v1717, 0.25
        %1722 = vrot.lane.b32.xlu0 %v951, 112
        %v1723 = vpop.permute.xlu0 %1722
        %1724 = vrot.lane.b32.xlu0 %v952, 112
        %v1725 = vpop.permute.xlu0 %1724
        %v1728 = vadd.f32 %v1718, %v1723
        %v1729 = vadd.f32 %v1719, %v1725
        %v1730 = vmax.f32 %v1728, 0.0
        %v1731 = vmax.f32 %v1729, 0.0
        %v1732 = vld [vmem:[#allocation5 + $0x40] sm:$0xff]
        %v1733 = vld [vmem:[#allocation5 + $0xb0] sm:$0xf]
        %1735 = vset.pattern.permute.xlu0 0
        %1736 = vperm.xlu0 %1735, %v1732
        %v1737 = vpop.permute.xlu0 %1736
        %1740 = vset.pattern.permute.xlu0 0
        %1741 = vperm.xlu0 %1740, %v1733
        %v1742 = vpop.permute.xlu0 %1741
        %v1744 = vmul.f32 %v1730, %v1737
        %v1745 = vmul.f32 %v1731, %v1742
        %1746 = vset.pattern.permute.xlu0 1
        %1747 = vperm.xlu0 %1746, %v1732
        %v1748 = vpop.permute.xlu0 %1747
        %1750 = vset.pattern.permute.xlu0 1
        %1751 = vperm.xlu0 %1750, %v1733
        %v1752 = vpop.permute.xlu0 %1751
        %v1754 = vadd.f32 %v1744, %v1748
        %v1755 = vadd.f32 %v1745, %v1752
        %v1756 = vpack.c.bf16 %v1755, %v1754
        %v1757 = vld [vmem:[#allocation3 + $0x1e0] sm:$0xf]
        %v1758 = vld [vmem:[#allocation3 + $0x1e8] sm:$0xf]
        %v1759 = vld [vmem:[#allocation5 + $0x48] ss:$0 sm:$0xff]
        %v1762 = vunpack.c.l.b16 %v1757
        %v1763 = vunpack.c.l.b16 %v1758
        %v1764 = vpack.c.b16 %v1763, %v1762
        %v1767 = vsel %vm794, %v1756, 0
        %1769 = vmatprep.subr.bf16.mxu0 0
        %1770 = vmatpush1.bf16.msra.mxu0 0
        %1771 = vmatprep.subr.bf16.mxu0 0
        %1772 = vmatpush1.bf16.msra.mxu0 0
        %1773 = vmatprep.subr.bf16.mxu0 0
        %1774 = vmatpush1.bf16.msra.mxu0 0
        %1775 = vmatprep.subr.bf16.mxu0 0
        %1776 = vmatpush1.bf16.msra.mxu0 0
        %1777 = vmatprep.subr.bf16.mxu0 0
        %1778 = vmatpush1.bf16.msra.mxu0 0
        %1779 = vmatprep.subr.bf16.mxu0 0
        %1780 = vmatpush1.bf16.msra.mxu0 0
        %1781 = vmatprep.subr.bf16.mxu0 0
        %1782 = vmatpush1.bf16.msra.mxu0 0
        %1783 = vmatprep.subr.bf16.mxu0 0
        %1784 = vmatpush1.bf16.msra.mxu0 %v1764
        %1785 = vmatprep.subr.bf16.mxu0 0
        %1786 = vmatpush2.bf16.msra.mxu0 0
        %1787 = vmatprep.subr.bf16.mxu0 0
        %1788 = vmatpush2.bf16.msra.mxu0 0
        %1789 = vmatprep.subr.bf16.mxu0 0
        %1790 = vmatpush2.bf16.msra.mxu0 0
        %1791 = vmatprep.subr.bf16.mxu0 0
        %1792 = vmatpush2.bf16.msra.mxu0 0
        %1793 = vmatprep.subr.bf16.mxu0 0
        %1794 = vmatpush2.bf16.msra.mxu0 0
        %1795 = vmatprep.subr.bf16.mxu0 0
        %1796 = vmatpush2.bf16.msra.mxu0 0
        %1797 = vmatprep.subr.bf16.mxu0 0
        %1798 = vmatpush2.bf16.msra.mxu0 0
        %1799 = vmatprep.subr.bf16.mxu0 0
        %1800 = vmatpush2.bf16.msra.mxu0 0
        %1801 = vmatprep.mubr.bf16.mxu0 0
        %1802 = vmatmul.mubr.bf16.gmra.mxu0 %v1767
        %v1803 = vpop.f32.mrf.mxu0
        %v1804 = vadd.f32 %v1759, %v1803
        %v1805 = vpop.f32.mrf.mxu0
        %v1806 = vpop.f32.mrf.mxu0
        %v1807 = vadd.f32 %v1759, %v1806
        %v1808 = vpop.f32.mrf.mxu0
        %1809 = vdwg.mxu0
        %v1810 = vmax.f32 %v1804, 0.0
        %v1811 = vmax.f32 %v1807, 0.0
        %v1812 = vld [vmem:[#allocation5 + $0x50] ss:$0 sm:$0xff]
        %v1813 = vmul.f32 %v1810, %v1812
        %v1814 = vmul.f32 %v1811, %v1812
        %v1815 = vld [vmem:[#allocation5 + $0x58] ss:$0 sm:$0xff]
        %v1816 = vadd.f32 %v1813, %v1815
        %v1817 = vadd.f32 %v1814, %v1815
        %v1818 = vpack.c.bf16 %v1817, %v1816
        %v1819 = vld [vmem:[#allocation3 + $0x1f0] sm:$0xf]
        %v1820 = vld [vmem:[#allocation3 + $0x1f8] sm:$0xf]
        %v1821 = vld [vmem:[#allocation3 + $0x200] sm:$0xf]
        %v1822 = vld [vmem:[#allocation3 + $0x208] sm:$0xf]
        %v1823 = vld [vmem:[#allocation5 + $0x60] ss:$0 sm:$0xff]
        %v1828 = vunpack.c.l.b16 %v1819
        %v1829 = vunpack.c.l.b16 %v1820
        %v1830 = vunpack.c.l.b16 %v1821
        %v1831 = vunpack.c.l.b16 %v1822
        %v1832 = vpack.c.b16 %v1829, %v1828
        %v1833 = vpack.c.b16 %v1831, %v1830
        %v1837 = vsel %vm270, %v1818, 0
        %1839 = vmatprep.subr.bf16.mxu0 0
        %1840 = vmatpush1.bf16.msra.mxu0 0
        %1841 = vmatprep.subr.bf16.mxu0 0
        %1842 = vmatpush1.bf16.msra.mxu0 0
        %1843 = vmatprep.subr.bf16.mxu0 0
        %1844 = vmatpush1.bf16.msra.mxu0 0
        %1845 = vmatprep.subr.bf16.mxu0 0
        %1846 = vmatpush1.bf16.msra.mxu0 0
        %1847 = vmatprep.subr.bf16.mxu0 0
        %1848 = vmatpush1.bf16.msra.mxu0 0
        %1849 = vmatprep.subr.bf16.mxu0 0
        %1850 = vmatpush1.bf16.msra.mxu0 0
        %1851 = vmatprep.subr.bf16.mxu0 0
        %1852 = vmatpush1.bf16.msra.mxu0 %v1833
        %1853 = vmatprep.subr.bf16.mxu0 0
        %1854 = vmatpush1.bf16.msra.mxu0 %v1832
        %1855 = vmatprep.subr.bf16.mxu0 0
        %1856 = vmatpush2.bf16.msra.mxu0 0
        %1857 = vmatprep.subr.bf16.mxu0 0
        %1858 = vmatpush2.bf16.msra.mxu0 0
        %1859 = vmatprep.subr.bf16.mxu0 0
        %1860 = vmatpush2.bf16.msra.mxu0 0
        %1861 = vmatprep.subr.bf16.mxu0 0
        %1862 = vmatpush2.bf16.msra.mxu0 0
        %1863 = vmatprep.subr.bf16.mxu0 0
        %1864 = vmatpush2.bf16.msra.mxu0 0
        %1865 = vmatprep.subr.bf16.mxu0 0
        %1866 = vmatpush2.bf16.msra.mxu0 0
        %1867 = vmatprep.subr.bf16.mxu0 0
        %1868 = vmatpush2.bf16.msra.mxu0 0
        %1869 = vmatprep.subr.bf16.mxu0 0
        %1870 = vmatpush2.bf16.msra.mxu0 0
        %1871 = vmatprep.mubr.bf16.mxu0 0
        %1872 = vmatmul.mubr.bf16.gmra.mxu0 %v1837
        %v1873 = vpop.f32.mrf.mxu0
        %v1874 = vadd.f32 %v1823, %v1873
        %v1875 = vpop.f32.mrf.mxu0
        %v1876 = vpop.f32.mrf.mxu0
        %v1877 = vadd.f32 %v1823, %v1876
        %v1878 = vpop.f32.mrf.mxu0
        %1879 = vdwg.mxu0
        %1880 = vst.msk [vmem:[%s227] sm:$0xff] %vm608, %v1874
        %vm1881 = vcmask 27648
        %1882 = vst.msk [vmem:[%s227 + $0x8] sm:$0xf] %vm1881, %v1877
        %p1883 = scmp.lt.s32.totalorder %s17, 1
        %s1884 = scalar_select %p1883, %s17, 1
        %s1885 = smul.addr %s1884, 2
        %s1886 = smul.addr %s1885, 8
        %s1887 = scalar_lea.vmem %s4, %s1886
        // Predicated region
        $region45: #{tpu_custom_call.1} parent=35 // pred_check
          %p1888 = pneg %p124
        $region46: #{tpu_custom_call.1} parent=35 // pred_check_branch
          %1890 = sbr.rel (%p1888) target = $region48
        $region47: #{tpu_custom_call.1} parent=35 // pred_region
          _
        $region48: #{tpu_custom_call.1} parent=35 // pred_fallthru
          _
      $region36: #{tpu_custom_call.1} parent=5 // pred_fallthru
        _
      %p1891 = scmp.le.s32.totalorder 2, %s12
      // Predicated region
      $region49: #{tpu_custom_call.1} parent=5 // pred_check
        %p1892 = pneg %p1891
      $region50: #{tpu_custom_call.1} parent=5 // pred_check_branch
        %1894 = sbr.rel (%p1892) target = $region52
      $region51: #{tpu_custom_call.1} parent=5 // pred_region
        %s1895 = ssub.s32 %s12, 2
        // Predicated region
        $region53: #{tpu_custom_call.1} parent=51 // pred_check
          %p1896 = pneg %p130
        $region54: #{tpu_custom_call.1} parent=51 // pred_check_branch
          %1898 = sbr.rel (%p1896) target = $region56
        $region55: #{tpu_custom_call.1} parent=51 // pred_region
          %p1899 = scmp.lt.s32.totalorder %s18, 1
          %s1900 = scalar_select %p1899, %s18, 1
          %s1901 = smul.addr %s1900, 2
          %s1902 = smul.addr %s1901, 8
          %s1903 = scalar_lea.vmem %s4, %s1902
        $region56: #{tpu_custom_call.1} parent=51 // pred_fallthru
          _
      $region52: #{tpu_custom_call.1} parent=5 // pred_fallthru
        _
    $region6: #{tpu_custom_call.1} parent=1 // loop_footer
      %s16 = sadd.s32 1, %s12
    $region7: #{tpu_custom_call.1} parent=1 // loop_footer_branch
      %11 = sbr.rel target = $region3
    $region8: #{tpu_custom_call.1} parent=1 // loop_exit
      _
    %1904 = vsyncpa [#allocation4], 1
    %s1905 = scalar_lea.sflag [#allocation4], 1
    %1906 = vsyncpa %s1905, 1
    %1907 = vsyncpa [#allocation6], 1

</llo_original>
